<compile_context>
chip_gen: v6e
topology: v6e:2x2x1
jax: 0.10.0
libtpu: 0.0.40
codegen_flags: <defaults>
</compile_context>

<pallas_src>
import jax
import jax.numpy as jnp
from jax.experimental import pallas as pl
from jax.experimental.pallas import tpu as pltpu


# ConvTranspose2d(k=4, s=2, p=1) sub-pixel decomposition (x_pad = 1px zero-pad):
#   out[2m+dy, 2n+dx] = sum_{a,b in {0,1}}
#       x_pad[m+dy+a, n+dx+b, :] @ W[:, :, _KIDX[dy][a], _KIDX[dx][b]]
_KIDX = ((3, 1), (2, 0))


def _upconv_cbn_kernel(xp_ref, scale_ref, shift_ref, w9_ref, out_ref):
    """One image per grid step: relu -> 9-tap transposed conv -> CBN affine."""
    _, Hp, Wp, Cin = xp_ref.shape
    H, W = Hp - 2, Wp - 2

    # ReLU on the bf16 padded tile (relu(0) == 0, so pre-padding is equivalent).
    x = jnp.maximum(xp_ref[0], 0.0)                          # (Hp, Wp, Cin) bf16

    # 9 MXU matmuls, one per 3x3 halo tap; each zero-padded (Cin, 4*Cout) tap
    # weight emits all 4 sub-pixel phases at once, so the result is built
    # directly in lane-dense (H*W, 4*Cout) form (f32 accumulation).
    acc = None
    for r in range(3):
        for c in range(3):
            patch = x[r:r + H, c:c + W, :].reshape(H * W, Cin)
            part = jnp.dot(patch, w9_ref[r * 3 + c],
                           preferred_element_type=jnp.float32)
            acc = part if acc is None else acc + part        # (H*W, 4*Cout)

    # Folded conditional-BN affine (per-image scale/shift, phase-tiled).
    out_ref[0] = (acc * scale_ref[0] + shift_ref[0]).astype(out_ref.dtype)


def _pack_tap_weights(w_up):
    """(Cin, Cout, 4, 4) PyTorch ConvTranspose2d weight -> (9, Cin, 4*Cout) bf16.

    Tap (r, c) of the 3x3 padded-input window contributes to phase (dy, dx)
    iff r - dy in {0, 1} and c - dx in {0, 1}; unused phase columns are zero.
    """
    cin, cout = w_up.shape[0], w_up.shape[1]
    zeros = jnp.zeros((cin, cout), w_up.dtype)
    taps = []
    for r in range(3):
        for c in range(3):
            cols = []
            for dy in range(2):
                for dx in range(2):
                    a, b = r - dy, c - dx
                    if 0 <= a <= 1 and 0 <= b <= 1:
                        cols.append(w_up[:, :, _KIDX[dy][a], _KIDX[dx][b]])
                    else:
                        cols.append(zeros)
            taps.append(jnp.concatenate(cols, axis=1))       # (Cin, 4*Cout)
    return jnp.stack(taps, axis=0).astype(jnp.bfloat16)      # (9, Cin, 4*Cout)


def init_params(key, cin, cout, cond_dim):
    """Deterministic synthetic parameters."""
    ks = jax.random.split(key, 7)
    return {
        # ConvTranspose2d weight, PyTorch layout (Cin, Cout, kH, kW); bias=False.
        "w_up": 0.1 * jax.random.normal(ks[0], (cin, cout, 4, 4), jnp.float32),
        # CBatchNorm2d conv_gamma / conv_beta (k=1 Conv1d == matmul), math layout.
        "wg": 0.05 * jax.random.normal(ks[1], (cond_dim, cout), jnp.float32),
        "bg": 1.0 + 0.05 * jax.random.normal(ks[2], (cout,), jnp.float32),
        "wb": 0.05 * jax.random.normal(ks[3], (cond_dim, cout), jnp.float32),
        "bb": 0.05 * jax.random.normal(ks[4], (cout,), jnp.float32),
        # BatchNorm2d(affine=False) running stats (eval mode).
        "bn_mean": 0.1 * jax.random.normal(ks[5], (cout,), jnp.float32),
        "bn_var": 1.0 + 0.1 * jax.random.uniform(ks[6], (cout,), jnp.float32),
    }


def upconv2d_block_cbn_cond(x, cond, params, skip_input=None, *, eps=1e-5):
    """x: (B, Cin, H, W), cond: (B, cond_dim) -> (B, Cout[+Cskip], 2H, 2W).

    Output is bf16 (f32 only when concatenated with an f32 skip_input).
    """
    B, Cin, H, W = x.shape
    w_up = params["w_up"]
    Cout = w_up.shape[1]
    Hp, Wp = H + 2, W + 2

    # Fused (under jit) NCHW->NHWC transpose + 1px zero-pad + bf16 cast.
    xp = jnp.pad(jnp.transpose(x, (0, 2, 3, 1)),
                 ((0, 0), (1, 1), (1, 1), (0, 0))).astype(jnp.bfloat16)

    # Zero-padded per-tap weights producing all 4 sub-pixel phases per dot.
    w9 = _pack_tap_weights(w_up)

    # Conditional BN affine + running-stat fold in plain JAX (tiny matmuls),
    # tiled over the 4 sub-pixel phases to match the lane-dense kernel output.
    gamma = cond @ params["wg"] + params["bg"]               # (B, Cout)
    beta = cond @ params["wb"] + params["bb"]
    inv_std = 1.0 / jnp.sqrt(params["bn_var"] + eps)
    scale = gamma * inv_std
    shift = beta - gamma * params["bn_mean"] * inv_std
    scale4 = jnp.tile(scale, (1, 4)).reshape(B, 1, 4 * Cout).astype(jnp.float32)
    shift4 = jnp.tile(shift, (1, 4)).reshape(B, 1, 4 * Cout).astype(jnp.float32)

    out = pl.pallas_call(
        _upconv_cbn_kernel,
        out_shape=jax.ShapeDtypeStruct((B, H * W, 4 * Cout), jnp.bfloat16),
        grid_spec=pltpu.PrefetchScalarGridSpec(
            num_scalar_prefetch=0,
            grid=(B,),
            in_specs=[
                pl.BlockSpec((1, Hp, Wp, Cin), lambda i: (i, 0, 0, 0)),
                pl.BlockSpec((1, 1, 4 * Cout), lambda i: (i, 0, 0)),
                pl.BlockSpec((1, 1, 4 * Cout), lambda i: (i, 0, 0)),
                pl.BlockSpec((9, Cin, 4 * Cout), lambda i: (0, 0, 0)),
            ],
            out_specs=pl.BlockSpec((1, H * W, 4 * Cout), lambda i: (i, 0, 0)),
        ),
        compiler_params=pltpu.CompilerParams(
            dimension_semantics=("parallel",),
            vmem_limit_bytes=32 * 1024 * 1024,
        ),
    )(xp, scale4, shift4, w9)

    # Single fused de-interleave: (B, H*W, 4*Cout) -> NCHW (B, Cout, 2H, 2W).
    # Last-axis layout is [phase(dy,dx)][channel] with phase = dy*2 + dx.
    out = out.reshape(B, H, W, 2, 2, Cout)
    out = jnp.transpose(out, (0, 5, 1, 3, 2, 4)).reshape(B, Cout, 2 * H, 2 * W)

    if skip_input is not None:
        # Preserve skip_input exactly; promote our block to its dtype.
        out = jnp.concatenate([out.astype(skip_input.dtype), skip_input], axis=1)
    return out


def _reference_forward(x, cond, params, *, eps=1e-5):
    """Plain-JAX f32 reference: relu -> ConvTranspose2d(4,2,1) -> CBN (eval)."""
    xr = jnp.maximum(x, 0.0)
    w_up = params["w_up"]                                    # (Cin, Cout, 4, 4)
    k = jnp.transpose(jnp.flip(w_up, (2, 3)), (1, 0, 2, 3))  # (Cout, Cin, 4, 4)
    y = jax.lax.conv_general_dilated(
        xr, k, window_strides=(1, 1), padding=((2, 2), (2, 2)),
        lhs_dilation=(2, 2), rhs_dilation=(1, 1),
        dimension_numbers=("NCHW", "OIHW", "NCHW"))
    inv_std = 1.0 / jnp.sqrt(params["bn_var"] + eps)
    net = (y - params["bn_mean"][None, :, None, None]) * inv_std[None, :, None, None]
    gamma = cond @ params["wg"] + params["bg"]
    beta = cond @ params["wb"] + params["bb"]
    return gamma[:, :, None, None] * net + beta[:, :, None, None]


if __name__ == "__main__":
    key = jax.random.PRNGKey(0)
    kx, kc, kp, ks = jax.random.split(key, 4)

    # Small deterministic shapes: batch=2, Cin=32, spatial 8x8 -> 16x16, Cout=64.
    B, Cin, H, W = 2, 32, 8, 8
    Cout, cond_dim = 64, 64

    x = jax.random.normal(kx, (B, Cin, H, W), jnp.float32)
    cond = jax.random.normal(kc, (B, cond_dim), jnp.float32)
    params = init_params(kp, Cin, Cout, cond_dim)

    fwd = jax.jit(upconv2d_block_cbn_cond)

    out = fwd(x, cond, params)
    jax.block_until_ready(out)
    assert out.shape == (B, Cout, 2 * H, 2 * W)
    assert bool(jnp.all(jnp.isfinite(out)))

    # Correctness vs a plain-JAX f32 reference (loose tol: bf16 I/O + bf16 MXU).
    ref = _reference_forward(x, cond, params)
    err = float(jnp.max(jnp.abs(out.astype(jnp.float32) - ref)))
    scale = float(jnp.max(jnp.abs(ref)))
    assert err <= 0.05 * scale + 0.05, f"mismatch: max|diff|={err}, max|ref|={scale}"

    # Exercise the skip_input concat path (pure glue).
    skip = jax.random.normal(ks, (B, 16, 2 * H, 2 * W), jnp.float32)
    out2 = fwd(x, cond, params, skip_input=skip)
    jax.block_until_ready(out2)
    assert out2.shape == (B, Cout + 16, 2 * H, 2 * W)

    print("KERNEL_OK")
</pallas_src>

<mosaic_0001>
module attributes {stable_mosaic.version = 11 : i64} {
  func.func @_upconv_cbn_kernel(%arg0: i32, %arg1: memref<1x10x10x32xbf16, #tpu.memory_space<vmem>>, %arg2: memref<1x1x256xf32, #tpu.memory_space<vmem>>, %arg3: memref<1x1x256xf32, #tpu.memory_space<vmem>>, %arg4: memref<9x32x256xbf16, #tpu.memory_space<vmem>>, %arg5: memref<1x64x256xbf16, #tpu.memory_space<vmem>>) attributes {dimension_semantics = [#tpu.dimension_semantics<parallel>], iteration_bounds = array<i64: 2>, scalar_prefetch = 0 : i64, scratch_operands = 0 : i64, tpu.core_type = #tpu.core_type<tc>, window_params = [{transform_indices = @transform_0, window_bounds = array<i64: 1, 10, 10, 32>}, {transform_indices = @transform_1, window_bounds = array<i64: 1, 1, 256>}, {transform_indices = @transform_2, window_bounds = array<i64: 1, 1, 256>}, {pipeline_mode = #tpu.pipeline_mode<synchronous>, transform_indices = @transform_3, window_bounds = array<i64: 9, 32, 256>}, {transform_indices = @transform_4, window_bounds = array<i64: 1, 64, 256>}]} {
    %c0 = arith.constant 0 : index
    %c0_0 = arith.constant 0 : index
    %c0_1 = arith.constant 0 : index
    %c0_2 = arith.constant 0 : index
    %0 = vector.load %arg1[%c0, %c0_0, %c0_1, %c0_2] : memref<1x10x10x32xbf16, #tpu.memory_space<vmem>>, vector<1x10x10x32xbf16>
    %1 = vector.shape_cast %0 : vector<1x10x10x32xbf16> to vector<10x10x32xbf16>
    %cst = arith.constant 0.000000e+00 : bf16
    %2 = vector.broadcast %cst : bf16 to vector<10x10x32xbf16>
    %3 = arith.maximumf %1, %2 : vector<10x10x32xbf16>
    %4 = vector.extract_strided_slice %3 {offsets = [0, 0, 0], sizes = [8, 8, 32], strides = [1, 1, 1]} : vector<10x10x32xbf16> to vector<8x8x32xbf16>
    %5 = vector.shape_cast %4 : vector<8x8x32xbf16> to vector<64x32xbf16>
    %c0_3 = arith.constant 0 : index
    %c0_4 = arith.constant 0 : index
    %c0_5 = arith.constant 0 : index
    %6 = vector.load %arg4[%c0_3, %c0_4, %c0_5] : memref<9x32x256xbf16, #tpu.memory_space<vmem>>, vector<1x32x256xbf16>
    %7 = vector.shape_cast %6 : vector<1x32x256xbf16> to vector<32x256xbf16>
    %cst_6 = arith.constant dense<0.000000e+00> : vector<64x256xf32>
    %8 = tpu.matmul %5, %7, %cst_6 {dimension_numbers = #tpu.dot_dimension_numbers<[1], [0], [0], [1], [0, 0, 1, 1], [], []>} : vector<64x32xbf16>, vector<32x256xbf16>, vector<64x256xf32> -> vector<64x256xf32>
    %9 = vector.extract_strided_slice %3 {offsets = [0, 1, 0], sizes = [8, 8, 32], strides = [1, 1, 1]} : vector<10x10x32xbf16> to vector<8x8x32xbf16>
    %10 = vector.shape_cast %9 : vector<8x8x32xbf16> to vector<64x32xbf16>
    %c1 = arith.constant 1 : index
    %c0_7 = arith.constant 0 : index
    %c0_8 = arith.constant 0 : index
    %11 = vector.load %arg4[%c1, %c0_7, %c0_8] : memref<9x32x256xbf16, #tpu.memory_space<vmem>>, vector<1x32x256xbf16>
    %12 = vector.shape_cast %11 : vector<1x32x256xbf16> to vector<32x256xbf16>
    %cst_9 = arith.constant dense<0.000000e+00> : vector<64x256xf32>
    %13 = tpu.matmul %10, %12, %cst_9 {dimension_numbers = #tpu.dot_dimension_numbers<[1], [0], [0], [1], [0, 0, 1, 1], [], []>} : vector<64x32xbf16>, vector<32x256xbf16>, vector<64x256xf32> -> vector<64x256xf32>
    %14 = arith.addf %8, %13 : vector<64x256xf32>
    %15 = vector.extract_strided_slice %3 {offsets = [0, 2, 0], sizes = [8, 8, 32], strides = [1, 1, 1]} : vector<10x10x32xbf16> to vector<8x8x32xbf16>
    %16 = vector.shape_cast %15 : vector<8x8x32xbf16> to vector<64x32xbf16>
    %c2 = arith.constant 2 : index
    %c0_10 = arith.constant 0 : index
    %c0_11 = arith.constant 0 : index
    %17 = vector.load %arg4[%c2, %c0_10, %c0_11] : memref<9x32x256xbf16, #tpu.memory_space<vmem>>, vector<1x32x256xbf16>
    %18 = vector.shape_cast %17 : vector<1x32x256xbf16> to vector<32x256xbf16>
    %cst_12 = arith.constant dense<0.000000e+00> : vector<64x256xf32>
    %19 = tpu.matmul %16, %18, %cst_12 {dimension_numbers = #tpu.dot_dimension_numbers<[1], [0], [0], [1], [0, 0, 1, 1], [], []>} : vector<64x32xbf16>, vector<32x256xbf16>, vector<64x256xf32> -> vector<64x256xf32>
    %20 = arith.addf %14, %19 : vector<64x256xf32>
    %21 = vector.extract_strided_slice %3 {offsets = [1, 0, 0], sizes = [8, 8, 32], strides = [1, 1, 1]} : vector<10x10x32xbf16> to vector<8x8x32xbf16>
    %22 = vector.shape_cast %21 : vector<8x8x32xbf16> to vector<64x32xbf16>
    %c3 = arith.constant 3 : index
    %c0_13 = arith.constant 0 : index
    %c0_14 = arith.constant 0 : index
    %23 = vector.load %arg4[%c3, %c0_13, %c0_14] : memref<9x32x256xbf16, #tpu.memory_space<vmem>>, vector<1x32x256xbf16>
    %24 = vector.shape_cast %23 : vector<1x32x256xbf16> to vector<32x256xbf16>
    %cst_15 = arith.constant dense<0.000000e+00> : vector<64x256xf32>
    %25 = tpu.matmul %22, %24, %cst_15 {dimension_numbers = #tpu.dot_dimension_numbers<[1], [0], [0], [1], [0, 0, 1, 1], [], []>} : vector<64x32xbf16>, vector<32x256xbf16>, vector<64x256xf32> -> vector<64x256xf32>
    %26 = arith.addf %20, %25 : vector<64x256xf32>
    %27 = vector.extract_strided_slice %3 {offsets = [1, 1, 0], sizes = [8, 8, 32], strides = [1, 1, 1]} : vector<10x10x32xbf16> to vector<8x8x32xbf16>
    %28 = vector.shape_cast %27 : vector<8x8x32xbf16> to vector<64x32xbf16>
    %c4 = arith.constant 4 : index
    %c0_16 = arith.constant 0 : index
    %c0_17 = arith.constant 0 : index
    %29 = vector.load %arg4[%c4, %c0_16, %c0_17] : memref<9x32x256xbf16, #tpu.memory_space<vmem>>, vector<1x32x256xbf16>
    %30 = vector.shape_cast %29 : vector<1x32x256xbf16> to vector<32x256xbf16>
    %cst_18 = arith.constant dense<0.000000e+00> : vector<64x256xf32>
    %31 = tpu.matmul %28, %30, %cst_18 {dimension_numbers = #tpu.dot_dimension_numbers<[1], [0], [0], [1], [0, 0, 1, 1], [], []>} : vector<64x32xbf16>, vector<32x256xbf16>, vector<64x256xf32> -> vector<64x256xf32>
    %32 = arith.addf %26, %31 : vector<64x256xf32>
    %33 = vector.extract_strided_slice %3 {offsets = [1, 2, 0], sizes = [8, 8, 32], strides = [1, 1, 1]} : vector<10x10x32xbf16> to vector<8x8x32xbf16>
    %34 = vector.shape_cast %33 : vector<8x8x32xbf16> to vector<64x32xbf16>
    %c5 = arith.constant 5 : index
    %c0_19 = arith.constant 0 : index
    %c0_20 = arith.constant 0 : index
    %35 = vector.load %arg4[%c5, %c0_19, %c0_20] : memref<9x32x256xbf16, #tpu.memory_space<vmem>>, vector<1x32x256xbf16>
    %36 = vector.shape_cast %35 : vector<1x32x256xbf16> to vector<32x256xbf16>
    %cst_21 = arith.constant dense<0.000000e+00> : vector<64x256xf32>
    %37 = tpu.matmul %34, %36, %cst_21 {dimension_numbers = #tpu.dot_dimension_numbers<[1], [0], [0], [1], [0, 0, 1, 1], [], []>} : vector<64x32xbf16>, vector<32x256xbf16>, vector<64x256xf32> -> vector<64x256xf32>
    %38 = arith.addf %32, %37 : vector<64x256xf32>
    %39 = vector.extract_strided_slice %3 {offsets = [2, 0, 0], sizes = [8, 8, 32], strides = [1, 1, 1]} : vector<10x10x32xbf16> to vector<8x8x32xbf16>
    %40 = vector.shape_cast %39 : vector<8x8x32xbf16> to vector<64x32xbf16>
    %c6 = arith.constant 6 : index
    %c0_22 = arith.constant 0 : index
    %c0_23 = arith.constant 0 : index
    %41 = vector.load %arg4[%c6, %c0_22, %c0_23] : memref<9x32x256xbf16, #tpu.memory_space<vmem>>, vector<1x32x256xbf16>
    %42 = vector.shape_cast %41 : vector<1x32x256xbf16> to vector<32x256xbf16>
    %cst_24 = arith.constant dense<0.000000e+00> : vector<64x256xf32>
    %43 = tpu.matmul %40, %42, %cst_24 {dimension_numbers = #tpu.dot_dimension_numbers<[1], [0], [0], [1], [0, 0, 1, 1], [], []>} : vector<64x32xbf16>, vector<32x256xbf16>, vector<64x256xf32> -> vector<64x256xf32>
    %44 = arith.addf %38, %43 : vector<64x256xf32>
    %45 = vector.extract_strided_slice %3 {offsets = [2, 1, 0], sizes = [8, 8, 32], strides = [1, 1, 1]} : vector<10x10x32xbf16> to vector<8x8x32xbf16>
    %46 = vector.shape_cast %45 : vector<8x8x32xbf16> to vector<64x32xbf16>
    %c7 = arith.constant 7 : index
    %c0_25 = arith.constant 0 : index
    %c0_26 = arith.constant 0 : index
    %47 = vector.load %arg4[%c7, %c0_25, %c0_26] : memref<9x32x256xbf16, #tpu.memory_space<vmem>>, vector<1x32x256xbf16>
    %48 = vector.shape_cast %47 : vector<1x32x256xbf16> to vector<32x256xbf16>
    %cst_27 = arith.constant dense<0.000000e+00> : vector<64x256xf32>
    %49 = tpu.matmul %46, %48, %cst_27 {dimension_numbers = #tpu.dot_dimension_numbers<[1], [0], [0], [1], [0, 0, 1, 1], [], []>} : vector<64x32xbf16>, vector<32x256xbf16>, vector<64x256xf32> -> vector<64x256xf32>
    %50 = arith.addf %44, %49 : vector<64x256xf32>
    %51 = vector.extract_strided_slice %3 {offsets = [2, 2, 0], sizes = [8, 8, 32], strides = [1, 1, 1]} : vector<10x10x32xbf16> to vector<8x8x32xbf16>
    %52 = vector.shape_cast %51 : vector<8x8x32xbf16> to vector<64x32xbf16>
    %c8 = arith.constant 8 : index
    %c0_28 = arith.constant 0 : index
    %c0_29 = arith.constant 0 : index
    %53 = vector.load %arg4[%c8, %c0_28, %c0_29] : memref<9x32x256xbf16, #tpu.memory_space<vmem>>, vector<1x32x256xbf16>
    %54 = vector.shape_cast %53 : vector<1x32x256xbf16> to vector<32x256xbf16>
    %cst_30 = arith.constant dense<0.000000e+00> : vector<64x256xf32>
    %55 = tpu.matmul %52, %54, %cst_30 {dimension_numbers = #tpu.dot_dimension_numbers<[1], [0], [0], [1], [0, 0, 1, 1], [], []>} : vector<64x32xbf16>, vector<32x256xbf16>, vector<64x256xf32> -> vector<64x256xf32>
    %56 = arith.addf %50, %55 : vector<64x256xf32>
    %c0_31 = arith.constant 0 : index
    %c0_32 = arith.constant 0 : index
    %c0_33 = arith.constant 0 : index
    %57 = vector.load %arg2[%c0_31, %c0_32, %c0_33] : memref<1x1x256xf32, #tpu.memory_space<vmem>>, vector<1x1x256xf32>
    %58 = vector.shape_cast %57 : vector<1x1x256xf32> to vector<1x256xf32>
    %59 = vector.broadcast %58 : vector<1x256xf32> to vector<64x256xf32>
    %60 = arith.mulf %56, %59 : vector<64x256xf32>
    %c0_34 = arith.constant 0 : index
    %c0_35 = arith.constant 0 : index
    %c0_36 = arith.constant 0 : index
    %61 = vector.load %arg3[%c0_34, %c0_35, %c0_36] : memref<1x1x256xf32, #tpu.memory_space<vmem>>, vector<1x1x256xf32>
    %62 = vector.shape_cast %61 : vector<1x1x256xf32> to vector<1x256xf32>
    %63 = vector.broadcast %62 : vector<1x256xf32> to vector<64x256xf32>
    %64 = arith.addf %60, %63 : vector<64x256xf32>
    %65 = arith.truncf %64 : vector<64x256xf32> to vector<64x256xbf16>
    %c0_37 = arith.constant 0 : index
    %c0_38 = arith.constant 0 : index
    %c0_39 = arith.constant 0 : index
    %66 = vector.load %arg5[%c0_37, %c0_38, %c0_39] : memref<1x64x256xbf16, #tpu.memory_space<vmem>>, vector<1x64x256xbf16>
    %67 = vector.shape_cast %66 : vector<1x64x256xbf16> to vector<64x256xbf16>
    %68 = vector.shape_cast %65 : vector<64x256xbf16> to vector<1x64x256xbf16>
    tpu.vector_store %arg5[%c0_37, %c0_38, %c0_39], %68 {strides = array<i32>} : memref<1x64x256xbf16, #tpu.memory_space<vmem>>, vector<1x64x256xbf16>,
    return
  }
  func.func @transform_0(%arg0: i32) -> (i32, i32, i32, i32) {
    %c0_i32 = arith.constant 0 : i32
    %c0_i32_0 = arith.constant 0 : i32
    %c0_i32_1 = arith.constant 0 : i32
    %c0_i32_2 = arith.constant 0 : i32
    return %arg0, %c0_i32, %c0_i32_0, %c0_i32_1 : i32, i32, i32, i32
  }
  func.func @transform_1(%arg0: i32) -> (i32, i32, i32) {
    %c0_i32 = arith.constant 0 : i32
    %c0_i32_0 = arith.constant 0 : i32
    %c0_i32_1 = arith.constant 0 : i32
    return %arg0, %c0_i32, %c0_i32_0 : i32, i32, i32
  }
  func.func @transform_2(%arg0: i32) -> (i32, i32, i32) {
    %c0_i32 = arith.constant 0 : i32
    %c0_i32_0 = arith.constant 0 : i32
    %c0_i32_1 = arith.constant 0 : i32
    return %arg0, %c0_i32, %c0_i32_0 : i32, i32, i32
  }
  func.func @transform_3(%arg0: i32) -> (i32, i32, i32) {
    %c0_i32 = arith.constant 0 : i32
    %c0_i32_0 = arith.constant 0 : i32
    %c0_i32_1 = arith.constant 0 : i32
    %c0_i32_2 = arith.constant 0 : i32
    return %c0_i32, %c0_i32_0, %c0_i32_1 : i32, i32, i32
  }
  func.func @transform_4(%arg0: i32) -> (i32, i32, i32) {
    %c0_i32 = arith.constant 0 : i32
    %c0_i32_0 = arith.constant 0 : i32
    %c0_i32_1 = arith.constant 0 : i32
    return %arg0, %c0_i32, %c0_i32_0 : i32, i32, i32
  }
}

</mosaic_0001>

<llo_original>
// kernel: upconv2d_block_cbn_cond.1
$region0: #{upconv2d_block_cbn_cond.1}
  #allocation0 [shape = 'u32[]', space=smem, size = 0x4, offset = 0x4, fixed_abs, tag = 'smem constant byte address 0x4 - core index']
  #allocation1 [shape = 'u32[144,128]{1,0:T(1,128)}', space=vmem, size = 0x12000, scoped, tag = 'internal scratch']
  %s0 = inlined_call_operand.vmem [shape: bf16[2,10,10,32], index: 0, kind: input, shape index: {}]
  %s1 = inlined_call_operand.vmem [shape: f32[2,1,256], index: 1, kind: input, shape index: {}]
  %s2 = inlined_call_operand.vmem [shape: f32[2,1,256], index: 2, kind: input, shape index: {}]
  %s3 = inlined_call_operand.vmem [shape: bf16[9,32,256], index: 3, kind: input, shape index: {}]
  %s4 = inlined_call_operand.vmem [shape: bf16[2,64,256], index: 4, kind: output, shape index: {}]
  %s5 = sld [smem:[#allocation0]]
  $region49: #{upconv2d_block_cbn_cond.1} parent=0
    _
  %s7 = ssub.s32 1, %s5
  %s8 = scalar_select 0, %s7, %s5
  loop: start=0, step=1, limit=4
  $region2: #{upconv2d_block_cbn_cond.1} parent=0 // loop_pre_header
    _
  $region3: #{upconv2d_block_cbn_cond.1} parent=0 // loop_header
    %s10 = sphi 0, %s14
    %p11 = scmp.ge.s32.totalorder %s10, 4
    %s20 = sphi 0, %s22
    %s23 = sphi 0, %s20
    %s24 = sphi 0, %s23
    %s40 = sphi 0, %s24
    %s46 = sphi 0, %s48
    %s49 = sphi 0, %s46
    %s50 = sphi 0, %s49
    %s66 = sphi 0, %s50
    %s72 = sphi 0, %s74
    %s75 = sphi 0, %s72
    %s76 = sphi 0, %s75
    %s92 = sphi 0, %s76
    %s96 = sphi 0, %s96
    %s98 = sphi 0, %s96
    %s99 = sphi 0, %s98
    %s113 = sphi 0, %s99
    %s119 = sphi 0, %s121
    %s122 = sphi 0, %s119
    %s123 = sphi 0, %s122
    %s139 = sphi 0, %s123
  $region4: #{upconv2d_block_cbn_cond.1} parent=0 // loop_header_branch
    %13 = sbr.rel (%p11) target = $region8
  $region5: #{upconv2d_block_cbn_cond.1} parent=0 // loop_body
    %s15 = ssub.s32 %s10, 1
    %s16 = ssub.s32 %s10, 2
    %s17 = sadd.s32 %s10, 1
    %s18 = ssub.s32 %s10, %s17
    %p19 = scmp.eq.s32.totalorder %s18, 0
    %s21 = sadd.s32 %s20, 1
    %s22 = scalar_select %p19, %s20, %s21
    %p25 = pneg %p19
    %p26 = scmp.eq.s32.totalorder %s10, 1
    %p27 = por %p25, %p26
    %p28 = scmp.ne.s32.totalorder %s20, %s23
    %p29 = scmp.eq.s32.totalorder %s10, 0
    %p30 = por %p28, %p29
    %p31 = scmp.ne.s32.totalorder %s20, %s23
    %p32 = scmp.eq.s32.totalorder %s15, 1
    %p33 = por %p31, %p32
    %p34 = scmp.ne.s32.totalorder %s23, %s24
    %p35 = scmp.eq.s32.totalorder %s15, 0
    %p36 = por %p34, %p35
    %p37 = scmp.ne.s32.totalorder %s23, %s24
    %p38 = scmp.eq.s32.totalorder %s16, 1
    %p39 = por %p37, %p38
    %p41 = scmp.ne.s32.totalorder %s24, %s40
    %p42 = scmp.eq.s32.totalorder %s16, 0
    %p43 = por %p41, %p42
    %s44 = ssub.s32 %s10, %s17
    %p45 = scmp.eq.s32.totalorder %s44, 0
    %s47 = sadd.s32 %s46, 1
    %s48 = scalar_select %p45, %s46, %s47
    %p51 = pneg %p45
    %p52 = scmp.eq.s32.totalorder %s10, 1
    %p53 = por %p51, %p52
    %p54 = scmp.ne.s32.totalorder %s46, %s49
    %p55 = scmp.eq.s32.totalorder %s10, 0
    %p56 = por %p54, %p55
    %p57 = scmp.ne.s32.totalorder %s46, %s49
    %p58 = scmp.eq.s32.totalorder %s15, 1
    %p59 = por %p57, %p58
    %p60 = scmp.ne.s32.totalorder %s49, %s50
    %p61 = scmp.eq.s32.totalorder %s15, 0
    %p62 = por %p60, %p61
    %p63 = scmp.ne.s32.totalorder %s49, %s50
    %p64 = scmp.eq.s32.totalorder %s16, 1
    %p65 = por %p63, %p64
    %p67 = scmp.ne.s32.totalorder %s50, %s66
    %p68 = scmp.eq.s32.totalorder %s16, 0
    %p69 = por %p67, %p68
    %s70 = ssub.s32 %s10, %s17
    %p71 = scmp.eq.s32.totalorder %s70, 0
    %s73 = sadd.s32 %s72, 1
    %s74 = scalar_select %p71, %s72, %s73
    %p77 = pneg %p71
    %p78 = scmp.eq.s32.totalorder %s10, 1
    %p79 = por %p77, %p78
    %p80 = scmp.ne.s32.totalorder %s72, %s75
    %p81 = scmp.eq.s32.totalorder %s10, 0
    %p82 = por %p80, %p81
    %p83 = scmp.ne.s32.totalorder %s72, %s75
    %p84 = scmp.eq.s32.totalorder %s15, 1
    %p85 = por %p83, %p84
    %p86 = scmp.ne.s32.totalorder %s75, %s76
    %p87 = scmp.eq.s32.totalorder %s15, 0
    %p88 = por %p86, %p87
    %p89 = scmp.ne.s32.totalorder %s75, %s76
    %p90 = scmp.eq.s32.totalorder %s16, 1
    %p91 = por %p89, %p90
    %p93 = scmp.ne.s32.totalorder %s76, %s92
    %p94 = scmp.eq.s32.totalorder %s16, 0
    %p95 = por %p93, %p94
    %s97 = sadd.s32 %s96, 1
    %p100 = scmp.eq.s32.totalorder %s10, 1
    %p101 = scmp.ne.s32.totalorder %s96, %s98
    %p102 = scmp.eq.s32.totalorder %s10, 0
    %p103 = por %p101, %p102
    %p104 = scmp.ne.s32.totalorder %s96, %s98
    %p105 = scmp.eq.s32.totalorder %s15, 1
    %p106 = por %p104, %p105
    %p107 = scmp.ne.s32.totalorder %s98, %s99
    %p108 = scmp.eq.s32.totalorder %s15, 0
    %p109 = por %p107, %p108
    %p110 = scmp.ne.s32.totalorder %s98, %s99
    %p111 = scmp.eq.s32.totalorder %s16, 1
    %p112 = por %p110, %p111
    %p114 = scmp.ne.s32.totalorder %s99, %s113
    %p115 = scmp.eq.s32.totalorder %s16, 0
    %p116 = por %p114, %p115
    %s117 = ssub.s32 %s10, %s17
    %p118 = scmp.eq.s32.totalorder %s117, 0
    %s120 = sadd.s32 %s119, 1
    %s121 = scalar_select %p118, %s119, %s120
    %p124 = pneg %p118
    %p125 = scmp.eq.s32.totalorder %s10, 1
    %p126 = por %p124, %p125
    %p127 = scmp.ne.s32.totalorder %s119, %s122
    %p128 = scmp.eq.s32.totalorder %s10, 0
    %p129 = por %p127, %p128
    %p130 = scmp.ne.s32.totalorder %s119, %s122
    %p131 = scmp.eq.s32.totalorder %s15, 1
    %p132 = por %p130, %p131
    %p133 = scmp.ne.s32.totalorder %s122, %s123
    %p134 = scmp.eq.s32.totalorder %s15, 0
    %p135 = por %p133, %p134
    %p136 = scmp.ne.s32.totalorder %s122, %s123
    %p137 = scmp.eq.s32.totalorder %s16, 1
    %p138 = por %p136, %p137
    %p140 = scmp.ne.s32.totalorder %s123, %s139
    %p141 = scmp.eq.s32.totalorder %s16, 0
    %p142 = por %p140, %p141
    %p143 = scmp.le.s32.totalorder 1, %s10
    %p144 = scmp.lt.s32.totalorder %s10, 3
    %p145 = pnand %p143, %p144
    %p146 = pneg %p145
    // Predicated region
    $region9: #{upconv2d_block_cbn_cond.1} parent=5 // pred_check
      _
    $region10: #{upconv2d_block_cbn_cond.1} parent=5 // pred_check_branch
      %148 = sbr.rel (%p145) target = $region12
    $region11: #{upconv2d_block_cbn_cond.1} parent=5 // pred_region
      %s149 = ssub.s32 %s10, 1
      // Predicated region
      $region13: #{upconv2d_block_cbn_cond.1} parent=11 // pred_check
        %p150 = pneg %p109
      $region14: #{upconv2d_block_cbn_cond.1} parent=11 // pred_check_branch
        %152 = sbr.rel (%p150) target = $region16
      $region15: #{upconv2d_block_cbn_cond.1} parent=11 // pred_region
        _
      $region16: #{upconv2d_block_cbn_cond.1} parent=11 // pred_fallthru
        _
    $region12: #{upconv2d_block_cbn_cond.1} parent=5 // pred_fallthru
      _
    %p153 = scmp.lt.s32.totalorder %s10, 2
    // Predicated region
    $region17: #{upconv2d_block_cbn_cond.1} parent=5 // pred_check
      %p154 = pneg %p153
    $region18: #{upconv2d_block_cbn_cond.1} parent=5 // pred_check_branch
      %156 = sbr.rel (%p154) target = $region20
    $region19: #{upconv2d_block_cbn_cond.1} parent=5 // pred_region
      // Predicated region
      $region21: #{upconv2d_block_cbn_cond.1} parent=19 // pred_check
        %p157 = pneg %p30
      $region22: #{upconv2d_block_cbn_cond.1} parent=19 // pred_check_branch
        %159 = sbr.rel (%p157) target = $region24
      $region23: #{upconv2d_block_cbn_cond.1} parent=19 // pred_region
        %p160 = scmp.lt.s32.totalorder %s10, 1
        %s161 = scalar_select %p160, %s10, 1
        %s162 = smul.addr %s161, 20
        %s163 = smul.addr %s162, 4
        %s164 = scalar_lea.vmem %s0, %s163
      $region24: #{upconv2d_block_cbn_cond.1} parent=19 // pred_fallthru
        _
      // Predicated region
      $region25: #{upconv2d_block_cbn_cond.1} parent=19 // pred_check
        %p165 = pneg %p56
      $region26: #{upconv2d_block_cbn_cond.1} parent=19 // pred_check_branch
        %167 = sbr.rel (%p165) target = $region28
      $region27: #{upconv2d_block_cbn_cond.1} parent=19 // pred_region
        %p168 = scmp.lt.s32.totalorder %s10, 1
        %s169 = scalar_select %p168, %s10, 1
        %s170 = smul.addr %s169, 2
        %s171 = scalar_lea.vmem %s1, %s170
      $region28: #{upconv2d_block_cbn_cond.1} parent=19 // pred_fallthru
        _
      // Predicated region
      $region29: #{upconv2d_block_cbn_cond.1} parent=19 // pred_check
        %p172 = pneg %p82
      $region30: #{upconv2d_block_cbn_cond.1} parent=19 // pred_check_branch
        %174 = sbr.rel (%p172) target = $region32
      $region31: #{upconv2d_block_cbn_cond.1} parent=19 // pred_region
        %p175 = scmp.lt.s32.totalorder %s10, 1
        %s176 = scalar_select %p175, %s10, 1
        %s177 = smul.addr %s176, 2
        %s178 = scalar_lea.vmem %s2, %s177
      $region32: #{upconv2d_block_cbn_cond.1} parent=19 // pred_fallthru
        _
    $region20: #{upconv2d_block_cbn_cond.1} parent=5 // pred_fallthru
      _
    %p179 = scmp.le.s32.totalorder 1, %s10
    %p180 = scmp.lt.s32.totalorder %s10, 3
    %p181 = pnand %p179, %p180
    %p182 = pneg %p181
    // Predicated region
    $region33: #{upconv2d_block_cbn_cond.1} parent=5 // pred_check
      _
    $region34: #{upconv2d_block_cbn_cond.1} parent=5 // pred_check_branch
      %184 = sbr.rel (%p181) target = $region36
    $region35: #{upconv2d_block_cbn_cond.1} parent=5 // pred_region
      %s185 = ssub.s32 %s10, 1
      %p186 = scmp.lt.s32.totalorder %s15, 1
      %s187 = scalar_select %p186, %s15, 1
      %s188 = smul.addr %s187, 20
      %s189 = smul.addr %s188, 4
      %s190 = scalar_lea.vmem %s0, %s189
      %p191 = pneg %p36
      %p192 = pneg %p33
      %p193 = scmp.lt.s32.totalorder %s15, 1
      %s194 = scalar_select %p193, %s15, 1
      %s195 = smul.addr %s194, 2
      %s196 = scalar_lea.vmem %s1, %s195
      %p197 = pneg %p62
      %p198 = pneg %p59
      %p199 = scmp.lt.s32.totalorder %s15, 1
      %s200 = scalar_select %p199, %s15, 1
      %s201 = smul.addr %s200, 2
      %s202 = scalar_lea.vmem %s2, %s201
      %p203 = pneg %p88
      %p204 = pneg %p85
      %p205 = pneg %p109
      %p206 = pneg %p106
      %p207 = pneg %p135
      %p208 = pneg %p132
      %p209 = scmp.lt.s32.totalorder %s15, 1
      %s210 = scalar_select %p209, %s15, 1
      %s211 = smul.addr %s210, 16
      %s212 = smul.addr %s211, 4
      %s213 = scalar_lea.vmem %s4, %s212
      %p214 = scmp.lt.s32.totalorder %s15, 1
      %s215 = scalar_select %p214, %s15, 1
      %s216 = smul.addr %s215, 20
      %s217 = smul.addr %s216, 4
      %s218 = scalar_lea.vmem %s0, %s217
      %p219 = scmp.lt.s32.totalorder %s15, 1
      %s220 = scalar_select %p219, %s15, 1
      %s221 = smul.addr %s220, 2
      %s222 = scalar_lea.vmem %s1, %s221
      %p223 = scmp.lt.s32.totalorder %s15, 1
      %s224 = scalar_select %p223, %s15, 1
      %s225 = smul.addr %s224, 2
      %s226 = scalar_lea.vmem %s2, %s225
      %p227 = scmp.lt.s32.totalorder %s15, 1
      %s228 = scalar_select %p227, %s15, 1
      %s229 = smul.addr %s228, 16
      %s230 = smul.addr %s229, 4
      %s231 = scalar_lea.vmem %s4, %s230
      %v233 = vld [vmem:[%s218] sm:$0xf]
      %v234 = vld [vmem:[%s218 + $0x4] sm:$0x1]
      %v235 = vld [vmem:[%s218 + $0x8] sm:$0xf]
      %v236 = vld [vmem:[%s218 + $0xc] sm:$0x1]
      %v237 = vld [vmem:[%s218 + $0x10] sm:$0xf]
      %v238 = vld [vmem:[%s218 + $0x14] sm:$0x1]
      %v239 = vld [vmem:[%s218 + $0x18] sm:$0xf]
      %v240 = vld [vmem:[%s218 + $0x1c] sm:$0x1]
      %v241 = vld [vmem:[%s218 + $0x20] sm:$0xf]
      %v242 = vld [vmem:[%s218 + $0x24] sm:$0x1]
      %v243 = vld [vmem:[%s218 + $0x28] sm:$0xf]
      %v244 = vld [vmem:[%s218 + $0x2c] sm:$0x1]
      %v245 = vld [vmem:[%s218 + $0x30] sm:$0xf]
      %v246 = vld [vmem:[%s218 + $0x34] sm:$0x1]
      %v247 = vld [vmem:[%s218 + $0x38] sm:$0xf]
      %v248 = vld [vmem:[%s218 + $0x3c] sm:$0x1]
      %v249 = vld [vmem:[%s218 + $0x40] sm:$0xf]
      %v250 = vld [vmem:[%s218 + $0x44] sm:$0x1]
      %v251 = vld [vmem:[%s218 + $0x48] sm:$0xf]
      %v252 = vld [vmem:[%s218 + $0x4c] sm:$0x1]
      %v253 = vmax.bf16 %v233, 0
      %v254 = vmax.bf16 %v234, 0
      %v255 = vmax.bf16 %v235, 0
      %v256 = vmax.bf16 %v236, 0
      %v257 = vmax.bf16 %v237, 0
      %v258 = vmax.bf16 %v238, 0
      %v259 = vmax.bf16 %v239, 0
      %v260 = vmax.bf16 %v240, 0
      %v261 = vmax.bf16 %v241, 0
      %v262 = vmax.bf16 %v242, 0
      %v263 = vmax.bf16 %v243, 0
      %v264 = vmax.bf16 %v244, 0
      %v265 = vmax.bf16 %v245, 0
      %v266 = vmax.bf16 %v246, 0
      %v267 = vmax.bf16 %v247, 0
      %v268 = vmax.bf16 %v248, 0
      %v269 = vmax.bf16 %v249, 0
      %v270 = vmax.bf16 %v250, 0
      %v271 = vmax.bf16 %v251, 0
      %v272 = vmax.bf16 %v252, 0
      %v273 = vld [vmem:[%s3] sm:$0xff]
      %v274 = vld [vmem:[%s3 + $0x8] sm:$0xff]
      %v275 = vld [vmem:[%s3 + $0x10] sm:$0xff]
      %v276 = vld [vmem:[%s3 + $0x18] sm:$0xff]
      %vm277 = vsmask.f32 3328
      %vm278 = vsmask.f32 7440
      %vm279 = vmor %vm277, %vm278
      %v281 = vshrl.u32 %v253, 16
      %v283 = vrot.slane %v281, 4
      %v284 = vshll.u32 %v253, 16
      %v286 = vrot.slane %v284, 5
      %v287 = vor.u32 %v283, %v286
      %v288 = vrot.slane %v287, 4
      %v290 = vshll.u32 %v254, 16
      %v292 = vrot.slane %v290, 5
      %v293 = vsel %vm279, %v288, %v292
      %v295 = vshrl.u32 %v255, 16
      %v297 = vrot.slane %v295, 4
      %v298 = vshll.u32 %v255, 16
      %v300 = vrot.slane %v298, 5
      %v301 = vor.u32 %v297, %v300
      %v302 = vrot.slane %v301, 4
      %v304 = vshll.u32 %v256, 16
      %v306 = vrot.slane %v304, 5
      %v307 = vsel %vm279, %v302, %v306
      %v309 = vshrl.u32 %v257, 16
      %v311 = vrot.slane %v309, 4
      %v312 = vshll.u32 %v257, 16
      %v314 = vrot.slane %v312, 5
      %v315 = vor.u32 %v311, %v314
      %v316 = vrot.slane %v315, 4
      %v318 = vshll.u32 %v258, 16
      %v320 = vrot.slane %v318, 5
      %v321 = vsel %vm279, %v316, %v320
      %v323 = vshrl.u32 %v259, 16
      %v325 = vrot.slane %v323, 4
      %v326 = vshll.u32 %v259, 16
      %v328 = vrot.slane %v326, 5
      %v329 = vor.u32 %v325, %v328
      %v330 = vrot.slane %v329, 4
      %v332 = vshll.u32 %v260, 16
      %v334 = vrot.slane %v332, 5
      %v335 = vsel %vm279, %v330, %v334
      %v337 = vshrl.u32 %v261, 16
      %v339 = vrot.slane %v337, 4
      %v340 = vshll.u32 %v261, 16
      %v342 = vrot.slane %v340, 5
      %v343 = vor.u32 %v339, %v342
      %v344 = vrot.slane %v343, 4
      %v346 = vshll.u32 %v262, 16
      %v348 = vrot.slane %v346, 5
      %v349 = vsel %vm279, %v344, %v348
      %v351 = vshrl.u32 %v263, 16
      %v353 = vrot.slane %v351, 4
      %v354 = vshll.u32 %v263, 16
      %v356 = vrot.slane %v354, 5
      %v357 = vor.u32 %v353, %v356
      %v358 = vrot.slane %v357, 4
      %v360 = vshll.u32 %v264, 16
      %v362 = vrot.slane %v360, 5
      %v363 = vsel %vm279, %v358, %v362
      %v365 = vshrl.u32 %v265, 16
      %v367 = vrot.slane %v365, 4
      %v368 = vshll.u32 %v265, 16
      %v370 = vrot.slane %v368, 5
      %v371 = vor.u32 %v367, %v370
      %v372 = vrot.slane %v371, 4
      %v374 = vshll.u32 %v266, 16
      %v376 = vrot.slane %v374, 5
      %v377 = vsel %vm279, %v372, %v376
      %v379 = vshrl.u32 %v267, 16
      %v381 = vrot.slane %v379, 4
      %v382 = vshll.u32 %v267, 16
      %v384 = vrot.slane %v382, 5
      %v385 = vor.u32 %v381, %v384
      %v386 = vrot.slane %v385, 4
      %v388 = vshll.u32 %v268, 16
      %v390 = vrot.slane %v388, 5
      %v391 = vsel %vm279, %v386, %v390
      %s392 = scalar_lea.vmem %s3, 32
      %v393 = vld [vmem:[%s392] sm:$0xff]
      %v394 = vld [vmem:[%s392 + $0x8] sm:$0xff]
      %v395 = vld [vmem:[%s392 + $0x10] sm:$0xff]
      %v396 = vld [vmem:[%s392 + $0x18] sm:$0xff]
      %v397 = vunpack.c.l.b16 %v293
      %v398 = vunpack.c.l.b16 %v307
      %v399 = vunpack.c.l.b16 %v321
      %v400 = vunpack.c.l.b16 %v335
      %v401 = vunpack.c.l.b16 %v349
      %v402 = vunpack.c.l.b16 %v363
      %v403 = vunpack.c.l.b16 %v377
      %v404 = vunpack.c.l.b16 %v391
      %v405 = vpack.c.b16 %v398, %v397
      %v406 = vpack.c.b16 %v400, %v399
      %v407 = vpack.c.b16 %v402, %v401
      %v408 = vpack.c.b16 %v404, %v403
      %v413 = vunpack.c.l.b16 %v393
      %v414 = vunpack.c.h.b16 %v393
      %v415 = vunpack.c.l.b16 %v394
      %v416 = vunpack.c.h.b16 %v394
      %v417 = vunpack.c.l.b16 %v395
      %v418 = vunpack.c.h.b16 %v395
      %v419 = vunpack.c.l.b16 %v396
      %v420 = vunpack.c.h.b16 %v396
      %v421 = vpack.c.b16 %v415, %v413
      %v422 = vpack.c.b16 %v416, %v414
      %v423 = vpack.c.b16 %v419, %v417
      %v424 = vpack.c.b16 %v420, %v418
      %vm429 = vcmask 261120
      %v431 = vsel %vm429, %v405, 0
      %v434 = vsel %vm429, %v406, 0
      %v437 = vsel %vm429, %v407, 0
      %v440 = vsel %vm429, %v408, 0
      %442 = vmatprep.subr.bf16.mxu0 0
      %443 = vmatpush1.bf16.msra.mxu0 0
      %444 = vmatprep.subr.bf16.mxu0 0
      %445 = vmatpush1.bf16.msra.mxu0 0
      %446 = vmatprep.subr.bf16.mxu0 0
      %447 = vmatpush1.bf16.msra.mxu0 0
      %448 = vmatprep.subr.bf16.mxu0 0
      %449 = vmatpush1.bf16.msra.mxu0 0
      %450 = vmatprep.subr.bf16.mxu0 0
      %451 = vmatpush1.bf16.msra.mxu0 0
      %452 = vmatprep.subr.bf16.mxu0 0
      %453 = vmatpush1.bf16.msra.mxu0 0
      %454 = vmatprep.subr.bf16.mxu0 %v424
      %455 = vmatpush1.bf16.msra.mxu0 %v423
      %456 = vmatprep.subr.bf16.mxu0 %v422
      %457 = vmatpush1.bf16.msra.mxu0 %v421
      %458 = vmatprep.subr.bf16.mxu0 0
      %459 = vmatpush2.bf16.msra.mxu0 0
      %460 = vmatprep.subr.bf16.mxu0 0
      %461 = vmatpush2.bf16.msra.mxu0 0
      %462 = vmatprep.subr.bf16.mxu0 0
      %463 = vmatpush2.bf16.msra.mxu0 0
      %464 = vmatprep.subr.bf16.mxu0 0
      %465 = vmatpush2.bf16.msra.mxu0 0
      %466 = vmatprep.subr.bf16.mxu0 0
      %467 = vmatpush2.bf16.msra.mxu0 0
      %468 = vmatprep.subr.bf16.mxu0 0
      %469 = vmatpush2.bf16.msra.mxu0 0
      %470 = vmatprep.subr.bf16.mxu0 0
      %471 = vmatpush2.bf16.msra.mxu0 0
      %472 = vmatprep.subr.bf16.mxu0 0
      %473 = vmatpush2.bf16.msra.mxu0 0
      %474 = vmatprep.mubr.bf16.mxu0 0
      %475 = vmatmul.mubr.bf16.gmra.mxu0 %v431
      %v476 = vpop.f32.mrf.mxu0
      %v477 = vadd.f32 0.0, %v476
      %v478 = vpop.f32.mrf.mxu0
      %v479 = vadd.f32 0.0, %v478
      %v480 = vpop.f32.mrf.mxu0
      %v481 = vadd.f32 0.0, %v480
      %v482 = vpop.f32.mrf.mxu0
      %v483 = vadd.f32 0.0, %v482
      %484 = vmatprep.mubr.bf16.mxu0 0
      %485 = vmatmul.mubr.bf16.gmra.mxu0 %v434
      %v486 = vpop.f32.mrf.mxu0
      %v487 = vadd.f32 0.0, %v486
      %v488 = vpop.f32.mrf.mxu0
      %v489 = vadd.f32 0.0, %v488
      %v490 = vpop.f32.mrf.mxu0
      %v491 = vadd.f32 0.0, %v490
      %v492 = vpop.f32.mrf.mxu0
      %v493 = vadd.f32 0.0, %v492
      %494 = vmatprep.mubr.bf16.mxu0 0
      %495 = vmatmul.mubr.bf16.gmra.mxu0 %v437
      %v496 = vpop.f32.mrf.mxu0
      %v497 = vadd.f32 0.0, %v496
      %v498 = vpop.f32.mrf.mxu0
      %v499 = vadd.f32 0.0, %v498
      %v500 = vpop.f32.mrf.mxu0
      %v501 = vadd.f32 0.0, %v500
      %v502 = vpop.f32.mrf.mxu0
      %v503 = vadd.f32 0.0, %v502
      %504 = vmatprep.mubr.bf16.mxu0 0
      %505 = vmatmul.mubr.bf16.gmra.mxu0 %v440
      %v506 = vpop.f32.mrf.mxu0
      %v507 = vadd.f32 0.0, %v506
      %v508 = vpop.f32.mrf.mxu0
      %v509 = vadd.f32 0.0, %v508
      %v510 = vpop.f32.mrf.mxu0
      %v511 = vadd.f32 0.0, %v510
      %v512 = vpop.f32.mrf.mxu0
      %v513 = vadd.f32 0.0, %v512
      %514 = vdwg.mxu0
      %v523 = vunpack.c.l.b16 %v253
      %v524 = vunpack.c.l.b16 %v255
      %v525 = vunpack.c.l.b16 %v257
      %v526 = vunpack.c.l.b16 %v259
      %v527 = vunpack.c.l.b16 %v261
      %v528 = vunpack.c.l.b16 %v263
      %v529 = vunpack.c.l.b16 %v265
      %v530 = vunpack.c.l.b16 %v267
      %v531 = vpack.c.b16 %v524, %v523
      %v532 = vpack.c.b16 %v526, %v525
      %v533 = vpack.c.b16 %v528, %v527
      %v534 = vpack.c.b16 %v530, %v529
      %v539 = vunpack.c.l.b16 %v273
      %v540 = vunpack.c.h.b16 %v273
      %v541 = vunpack.c.l.b16 %v274
      %v542 = vunpack.c.h.b16 %v274
      %v543 = vunpack.c.l.b16 %v275
      %v544 = vunpack.c.h.b16 %v275
      %v545 = vunpack.c.l.b16 %v276
      %v546 = vunpack.c.h.b16 %v276
      %v547 = vpack.c.b16 %v541, %v539
      %v548 = vpack.c.b16 %v542, %v540
      %v549 = vpack.c.b16 %v545, %v543
      %v550 = vpack.c.b16 %v546, %v544
      %v556 = vsel %vm429, %v531, 0
      %v559 = vsel %vm429, %v532, 0
      %v562 = vsel %vm429, %v533, 0
      %v565 = vsel %vm429, %v534, 0
      %567 = vmatprep.subr.bf16.mxu0 0
      %568 = vmatpush1.bf16.msra.mxu0 0
      %569 = vmatprep.subr.bf16.mxu0 0
      %570 = vmatpush1.bf16.msra.mxu0 0
      %571 = vmatprep.subr.bf16.mxu0 0
      %572 = vmatpush1.bf16.msra.mxu0 0
      %573 = vmatprep.subr.bf16.mxu0 0
      %574 = vmatpush1.bf16.msra.mxu0 0
      %575 = vmatprep.subr.bf16.mxu0 0
      %576 = vmatpush1.bf16.msra.mxu0 0
      %577 = vmatprep.subr.bf16.mxu0 0
      %578 = vmatpush1.bf16.msra.mxu0 0
      %579 = vmatprep.subr.bf16.mxu0 %v550
      %580 = vmatpush1.bf16.msra.mxu0 %v549
      %581 = vmatprep.subr.bf16.mxu0 %v548
      %582 = vmatpush1.bf16.msra.mxu0 %v547
      %583 = vmatprep.subr.bf16.mxu0 0
      %584 = vmatpush2.bf16.msra.mxu0 0
      %585 = vmatprep.subr.bf16.mxu0 0
      %586 = vmatpush2.bf16.msra.mxu0 0
      %587 = vmatprep.subr.bf16.mxu0 0
      %588 = vmatpush2.bf16.msra.mxu0 0
      %589 = vmatprep.subr.bf16.mxu0 0
      %590 = vmatpush2.bf16.msra.mxu0 0
      %591 = vmatprep.subr.bf16.mxu0 0
      %592 = vmatpush2.bf16.msra.mxu0 0
      %593 = vmatprep.subr.bf16.mxu0 0
      %594 = vmatpush2.bf16.msra.mxu0 0
      %595 = vmatprep.subr.bf16.mxu0 0
      %596 = vmatpush2.bf16.msra.mxu0 0
      %597 = vmatprep.subr.bf16.mxu0 0
      %598 = vmatpush2.bf16.msra.mxu0 0
      %599 = vmatprep.mubr.bf16.mxu0 0
      %600 = vmatmul.mubr.bf16.gmra.mxu0 %v556
      %v601 = vpop.f32.mrf.mxu0
      %v602 = vadd.f32 %v477, %v601
      %v603 = vpop.f32.mrf.mxu0
      %v604 = vadd.f32 %v479, %v603
      %v605 = vpop.f32.mrf.mxu0
      %v606 = vadd.f32 %v481, %v605
      %v607 = vpop.f32.mrf.mxu0
      %v608 = vadd.f32 %v483, %v607
      %609 = vmatprep.mubr.bf16.mxu0 0
      %610 = vmatmul.mubr.bf16.gmra.mxu0 %v559
      %v611 = vpop.f32.mrf.mxu0
      %v612 = vadd.f32 %v487, %v611
      %v613 = vpop.f32.mrf.mxu0
      %v614 = vadd.f32 %v489, %v613
      %v615 = vpop.f32.mrf.mxu0
      %v616 = vadd.f32 %v491, %v615
      %v617 = vpop.f32.mrf.mxu0
      %v618 = vadd.f32 %v493, %v617
      %619 = vmatprep.mubr.bf16.mxu0 0
      %620 = vmatmul.mubr.bf16.gmra.mxu0 %v562
      %v621 = vpop.f32.mrf.mxu0
      %v622 = vadd.f32 %v497, %v621
      %v623 = vpop.f32.mrf.mxu0
      %v624 = vadd.f32 %v499, %v623
      %v625 = vpop.f32.mrf.mxu0
      %v626 = vadd.f32 %v501, %v625
      %v627 = vpop.f32.mrf.mxu0
      %v628 = vadd.f32 %v503, %v627
      %629 = vmatprep.mubr.bf16.mxu0 0
      %630 = vmatmul.mubr.bf16.gmra.mxu0 %v565
      %v631 = vpop.f32.mrf.mxu0
      %v632 = vadd.f32 %v507, %v631
      %v633 = vpop.f32.mrf.mxu0
      %v634 = vadd.f32 %v509, %v633
      %v635 = vpop.f32.mrf.mxu0
      %v636 = vadd.f32 %v511, %v635
      %v637 = vpop.f32.mrf.mxu0
      %v638 = vadd.f32 %v513, %v637
      %639 = vdwg.mxu0
      %vm648 = vcmask 1042432
      %vm649 = vcmask 1046532
      %vm650 = vmor %vm648, %vm649
      %v651 = vrot.slane %v253, 5
      %v652 = vrot.slane %v651, 4
      %v653 = vrot.slane %v254, 5
      %v654 = vsel %vm650, %v652, %v653
      %v655 = vrot.slane %v255, 5
      %v656 = vrot.slane %v655, 4
      %v657 = vrot.slane %v256, 5
      %v658 = vsel %vm650, %v656, %v657
      %v659 = vrot.slane %v257, 5
      %v660 = vrot.slane %v659, 4
      %v661 = vrot.slane %v258, 5
      %v662 = vsel %vm650, %v660, %v661
      %v663 = vrot.slane %v259, 5
      %v664 = vrot.slane %v663, 4
      %v665 = vrot.slane %v260, 5
      %v666 = vsel %vm650, %v664, %v665
      %v667 = vrot.slane %v261, 5
      %v668 = vrot.slane %v667, 4
      %v669 = vrot.slane %v262, 5
      %v670 = vsel %vm650, %v668, %v669
      %v671 = vrot.slane %v263, 5
      %v672 = vrot.slane %v671, 4
      %v673 = vrot.slane %v264, 5
      %v674 = vsel %vm650, %v672, %v673
      %v675 = vrot.slane %v265, 5
      %v676 = vrot.slane %v675, 4
      %v677 = vrot.slane %v266, 5
      %v678 = vsel %vm650, %v676, %v677
      %v679 = vrot.slane %v267, 5
      %v680 = vrot.slane %v679, 4
      %v681 = vrot.slane %v268, 5
      %v682 = vsel %vm650, %v680, %v681
      %s683 = scalar_lea.vmem %s3, 64
      %v684 = vld [vmem:[%s683] sm:$0xff]
      %v685 = vld [vmem:[%s683 + $0x8] sm:$0xff]
      %v686 = vld [vmem:[%s683 + $0x10] sm:$0xff]
      %v687 = vld [vmem:[%s683 + $0x18] sm:$0xff]
      %v688 = vunpack.c.l.b16 %v654
      %v689 = vunpack.c.l.b16 %v658
      %v690 = vunpack.c.l.b16 %v662
      %v691 = vunpack.c.l.b16 %v666
      %v692 = vunpack.c.l.b16 %v670
      %v693 = vunpack.c.l.b16 %v674
      %v694 = vunpack.c.l.b16 %v678
      %v695 = vunpack.c.l.b16 %v682
      %v696 = vpack.c.b16 %v689, %v688
      %v697 = vpack.c.b16 %v691, %v690
      %v698 = vpack.c.b16 %v693, %v692
      %v699 = vpack.c.b16 %v695, %v694
      %v704 = vunpack.c.l.b16 %v684
      %v705 = vunpack.c.h.b16 %v684
      %v706 = vunpack.c.l.b16 %v685
      %v707 = vunpack.c.h.b16 %v685
      %v708 = vunpack.c.l.b16 %v686
      %v709 = vunpack.c.h.b16 %v686
      %v710 = vunpack.c.l.b16 %v687
      %v711 = vunpack.c.h.b16 %v687
      %v712 = vpack.c.b16 %v706, %v704
      %v713 = vpack.c.b16 %v707, %v705
      %v714 = vpack.c.b16 %v710, %v708
      %v715 = vpack.c.b16 %v711, %v709
      %v721 = vsel %vm429, %v696, 0
      %v724 = vsel %vm429, %v697, 0
      %v727 = vsel %vm429, %v698, 0
      %v730 = vsel %vm429, %v699, 0
      %732 = vmatprep.subr.bf16.mxu0 0
      %733 = vmatpush1.bf16.msra.mxu0 0
      %734 = vmatprep.subr.bf16.mxu0 0
      %735 = vmatpush1.bf16.msra.mxu0 0
      %736 = vmatprep.subr.bf16.mxu0 0
      %737 = vmatpush1.bf16.msra.mxu0 0
      %738 = vmatprep.subr.bf16.mxu0 0
      %739 = vmatpush1.bf16.msra.mxu0 0
      %740 = vmatprep.subr.bf16.mxu0 0
      %741 = vmatpush1.bf16.msra.mxu0 0
      %742 = vmatprep.subr.bf16.mxu0 0
      %743 = vmatpush1.bf16.msra.mxu0 0
      %744 = vmatprep.subr.bf16.mxu0 %v715
      %745 = vmatpush1.bf16.msra.mxu0 %v714
      %746 = vmatprep.subr.bf16.mxu0 %v713
      %747 = vmatpush1.bf16.msra.mxu0 %v712
      %748 = vmatprep.subr.bf16.mxu0 0
      %749 = vmatpush2.bf16.msra.mxu0 0
      %750 = vmatprep.subr.bf16.mxu0 0
      %751 = vmatpush2.bf16.msra.mxu0 0
      %752 = vmatprep.subr.bf16.mxu0 0
      %753 = vmatpush2.bf16.msra.mxu0 0
      %754 = vmatprep.subr.bf16.mxu0 0
      %755 = vmatpush2.bf16.msra.mxu0 0
      %756 = vmatprep.subr.bf16.mxu0 0
      %757 = vmatpush2.bf16.msra.mxu0 0
      %758 = vmatprep.subr.bf16.mxu0 0
      %759 = vmatpush2.bf16.msra.mxu0 0
      %760 = vmatprep.subr.bf16.mxu0 0
      %761 = vmatpush2.bf16.msra.mxu0 0
      %762 = vmatprep.subr.bf16.mxu0 0
      %763 = vmatpush2.bf16.msra.mxu0 0
      %764 = vmatprep.mubr.bf16.mxu0 0
      %765 = vmatmul.mubr.bf16.gmra.mxu0 %v721
      %v766 = vpop.f32.mrf.mxu0
      %v767 = vadd.f32 0.0, %v766
      %v768 = vpop.f32.mrf.mxu0
      %v769 = vadd.f32 0.0, %v768
      %v770 = vpop.f32.mrf.mxu0
      %v771 = vadd.f32 0.0, %v770
      %v772 = vpop.f32.mrf.mxu0
      %v773 = vadd.f32 0.0, %v772
      %774 = vmatprep.mubr.bf16.mxu0 0
      %775 = vmatmul.mubr.bf16.gmra.mxu0 %v724
      %v776 = vpop.f32.mrf.mxu0
      %v777 = vadd.f32 0.0, %v776
      %v778 = vpop.f32.mrf.mxu0
      %v779 = vadd.f32 0.0, %v778
      %v780 = vpop.f32.mrf.mxu0
      %v781 = vadd.f32 0.0, %v780
      %v782 = vpop.f32.mrf.mxu0
      %v783 = vadd.f32 0.0, %v782
      %784 = vmatprep.mubr.bf16.mxu0 0
      %785 = vmatmul.mubr.bf16.gmra.mxu0 %v727
      %v786 = vpop.f32.mrf.mxu0
      %v787 = vadd.f32 0.0, %v786
      %v788 = vpop.f32.mrf.mxu0
      %v789 = vadd.f32 0.0, %v788
      %v790 = vpop.f32.mrf.mxu0
      %v791 = vadd.f32 0.0, %v790
      %v792 = vpop.f32.mrf.mxu0
      %v793 = vadd.f32 0.0, %v792
      %794 = vmatprep.mubr.bf16.mxu0 0
      %795 = vmatmul.mubr.bf16.gmra.mxu0 %v730
      %v796 = vpop.f32.mrf.mxu0
      %v797 = vadd.f32 0.0, %v796
      %v798 = vpop.f32.mrf.mxu0
      %v799 = vadd.f32 0.0, %v798
      %v800 = vpop.f32.mrf.mxu0
      %v801 = vadd.f32 0.0, %v800
      %v802 = vpop.f32.mrf.mxu0
      %v803 = vadd.f32 0.0, %v802
      %804 = vdwg.mxu0
      %v805 = vadd.f32 %v602, %v767
      %v806 = vadd.f32 %v604, %v769
      %v807 = vadd.f32 %v606, %v771
      %v808 = vadd.f32 %v608, %v773
      %v809 = vadd.f32 %v612, %v777
      %v810 = vadd.f32 %v614, %v779
      %v811 = vadd.f32 %v616, %v781
      %v812 = vadd.f32 %v618, %v783
      %v813 = vadd.f32 %v622, %v787
      %v814 = vadd.f32 %v624, %v789
      %v815 = vadd.f32 %v626, %v791
      %v816 = vadd.f32 %v628, %v793
      %v817 = vadd.f32 %v632, %v797
      %v818 = vadd.f32 %v634, %v799
      %v819 = vadd.f32 %v636, %v801
      %v820 = vadd.f32 %v638, %v803
      %s821 = scalar_lea.vmem %s3, 96
      %v822 = vld [vmem:[%s821] sm:$0xff]
      %v823 = vld [vmem:[%s821 + $0x8] sm:$0xff]
      %v824 = vld [vmem:[%s821 + $0x10] sm:$0xff]
      %v825 = vld [vmem:[%s821 + $0x18] sm:$0xff]
      %v827 = vunpack.c.l.b16 %v269
      %v828 = vpack.c.b16 %v525, %v524
      %v829 = vpack.c.b16 %v527, %v526
      %v830 = vpack.c.b16 %v529, %v528
      %v831 = vpack.c.b16 %v827, %v530
      %v836 = vunpack.c.l.b16 %v822
      %v837 = vunpack.c.h.b16 %v822
      %v838 = vunpack.c.l.b16 %v823
      %v839 = vunpack.c.h.b16 %v823
      %v840 = vunpack.c.l.b16 %v824
      %v841 = vunpack.c.h.b16 %v824
      %v842 = vunpack.c.l.b16 %v825
      %v843 = vunpack.c.h.b16 %v825
      %v844 = vpack.c.b16 %v838, %v836
      %v845 = vpack.c.b16 %v839, %v837
      %v846 = vpack.c.b16 %v842, %v840
      %v847 = vpack.c.b16 %v843, %v841
      %v853 = vsel %vm429, %v828, 0
      %v856 = vsel %vm429, %v829, 0
      %v859 = vsel %vm429, %v830, 0
      %v862 = vsel %vm429, %v831, 0
      %864 = vmatprep.subr.bf16.mxu0 0
      %865 = vmatpush1.bf16.msra.mxu0 0
      %866 = vmatprep.subr.bf16.mxu0 0
      %867 = vmatpush1.bf16.msra.mxu0 0
      %868 = vmatprep.subr.bf16.mxu0 0
      %869 = vmatpush1.bf16.msra.mxu0 0
      %870 = vmatprep.subr.bf16.mxu0 0
      %871 = vmatpush1.bf16.msra.mxu0 0
      %872 = vmatprep.subr.bf16.mxu0 0
      %873 = vmatpush1.bf16.msra.mxu0 0
      %874 = vmatprep.subr.bf16.mxu0 0
      %875 = vmatpush1.bf16.msra.mxu0 0
      %876 = vmatprep.subr.bf16.mxu0 %v847
      %877 = vmatpush1.bf16.msra.mxu0 %v846
      %878 = vmatprep.subr.bf16.mxu0 %v845
      %879 = vmatpush1.bf16.msra.mxu0 %v844
      %880 = vmatprep.subr.bf16.mxu0 0
      %881 = vmatpush2.bf16.msra.mxu0 0
      %882 = vmatprep.subr.bf16.mxu0 0
      %883 = vmatpush2.bf16.msra.mxu0 0
      %884 = vmatprep.subr.bf16.mxu0 0
      %885 = vmatpush2.bf16.msra.mxu0 0
      %886 = vmatprep.subr.bf16.mxu0 0
      %887 = vmatpush2.bf16.msra.mxu0 0
      %888 = vmatprep.subr.bf16.mxu0 0
      %889 = vmatpush2.bf16.msra.mxu0 0
      %890 = vmatprep.subr.bf16.mxu0 0
      %891 = vmatpush2.bf16.msra.mxu0 0
      %892 = vmatprep.subr.bf16.mxu0 0
      %893 = vmatpush2.bf16.msra.mxu0 0
      %894 = vmatprep.subr.bf16.mxu0 0
      %895 = vmatpush2.bf16.msra.mxu0 0
      %896 = vmatprep.mubr.bf16.mxu0 0
      %897 = vmatmul.mubr.bf16.gmra.mxu0 %v853
      %v898 = vpop.f32.mrf.mxu0
      %v899 = vadd.f32 0.0, %v898
      %v900 = vpop.f32.mrf.mxu0
      %v901 = vadd.f32 0.0, %v900
      %v902 = vpop.f32.mrf.mxu0
      %v903 = vadd.f32 0.0, %v902
      %v904 = vpop.f32.mrf.mxu0
      %v905 = vadd.f32 0.0, %v904
      %906 = vmatprep.mubr.bf16.mxu0 0
      %907 = vmatmul.mubr.bf16.gmra.mxu0 %v856
      %v908 = vpop.f32.mrf.mxu0
      %v909 = vadd.f32 0.0, %v908
      %v910 = vpop.f32.mrf.mxu0
      %v911 = vadd.f32 0.0, %v910
      %v912 = vpop.f32.mrf.mxu0
      %v913 = vadd.f32 0.0, %v912
      %v914 = vpop.f32.mrf.mxu0
      %v915 = vadd.f32 0.0, %v914
      %916 = vmatprep.mubr.bf16.mxu0 0
      %917 = vmatmul.mubr.bf16.gmra.mxu0 %v859
      %v918 = vpop.f32.mrf.mxu0
      %v919 = vadd.f32 0.0, %v918
      %v920 = vpop.f32.mrf.mxu0
      %v921 = vadd.f32 0.0, %v920
      %v922 = vpop.f32.mrf.mxu0
      %v923 = vadd.f32 0.0, %v922
      %v924 = vpop.f32.mrf.mxu0
      %v925 = vadd.f32 0.0, %v924
      %926 = vmatprep.mubr.bf16.mxu0 0
      %927 = vmatmul.mubr.bf16.gmra.mxu0 %v862
      %v928 = vpop.f32.mrf.mxu0
      %v929 = vadd.f32 0.0, %v928
      %v930 = vpop.f32.mrf.mxu0
      %v931 = vadd.f32 0.0, %v930
      %v932 = vpop.f32.mrf.mxu0
      %v933 = vadd.f32 0.0, %v932
      %v934 = vpop.f32.mrf.mxu0
      %v935 = vadd.f32 0.0, %v934
      %936 = vdwg.mxu0
      %v937 = vadd.f32 %v805, %v899
      %v938 = vadd.f32 %v806, %v901
      %v939 = vadd.f32 %v807, %v903
      %v940 = vadd.f32 %v808, %v905
      %v941 = vadd.f32 %v809, %v909
      %v942 = vadd.f32 %v810, %v911
      %v943 = vadd.f32 %v811, %v913
      %v944 = vadd.f32 %v812, %v915
      %v945 = vadd.f32 %v813, %v919
      %v946 = vadd.f32 %v814, %v921
      %v947 = vadd.f32 %v815, %v923
      %v948 = vadd.f32 %v816, %v925
      %v949 = vadd.f32 %v817, %v929
      %v950 = vadd.f32 %v818, %v931
      %v951 = vadd.f32 %v819, %v933
      %v952 = vadd.f32 %v820, %v935
      %v954 = vshrl.u32 %v269, 16
      %v956 = vrot.slane %v954, 4
      %v957 = vshll.u32 %v269, 16
      %v959 = vrot.slane %v957, 5
      %v960 = vor.u32 %v956, %v959
      %v961 = vrot.slane %v960, 4
      %v963 = vshll.u32 %v270, 16
      %v965 = vrot.slane %v963, 5
      %v966 = vsel %vm279, %v961, %v965
      %s967 = scalar_lea.vmem %s3, 128
      %v968 = vld [vmem:[%s967] sm:$0xff]
      %v969 = vld [vmem:[%s967 + $0x8] sm:$0xff]
      %v970 = vld [vmem:[%s967 + $0x10] sm:$0xff]
      %v971 = vld [vmem:[%s967 + $0x18] sm:$0xff]
      %v972 = vunpack.c.l.b16 %v966
      %v973 = vpack.c.b16 %v399, %v398
      %v974 = vpack.c.b16 %v401, %v400
      %v975 = vpack.c.b16 %v403, %v402
      %v976 = vpack.c.b16 %v972, %v404
      %v981 = vunpack.c.l.b16 %v968
      %v982 = vunpack.c.h.b16 %v968
      %v983 = vunpack.c.l.b16 %v969
      %v984 = vunpack.c.h.b16 %v969
      %v985 = vunpack.c.l.b16 %v970
      %v986 = vunpack.c.h.b16 %v970
      %v987 = vunpack.c.l.b16 %v971
      %v988 = vunpack.c.h.b16 %v971
      %v989 = vpack.c.b16 %v983, %v981
      %v990 = vpack.c.b16 %v984, %v982
      %v991 = vpack.c.b16 %v987, %v985
      %v992 = vpack.c.b16 %v988, %v986
      %v998 = vsel %vm429, %v973, 0
      %v1001 = vsel %vm429, %v974, 0
      %v1004 = vsel %vm429, %v975, 0
      %v1007 = vsel %vm429, %v976, 0
      %1009 = vmatprep.subr.bf16.mxu0 0
      %1010 = vmatpush1.bf16.msra.mxu0 0
      %1011 = vmatprep.subr.bf16.mxu0 0
      %1012 = vmatpush1.bf16.msra.mxu0 0
      %1013 = vmatprep.subr.bf16.mxu0 0
      %1014 = vmatpush1.bf16.msra.mxu0 0
      %1015 = vmatprep.subr.bf16.mxu0 0
      %1016 = vmatpush1.bf16.msra.mxu0 0
      %1017 = vmatprep.subr.bf16.mxu0 0
      %1018 = vmatpush1.bf16.msra.mxu0 0
      %1019 = vmatprep.subr.bf16.mxu0 0
      %1020 = vmatpush1.bf16.msra.mxu0 0
      %1021 = vmatprep.subr.bf16.mxu0 %v992
      %1022 = vmatpush1.bf16.msra.mxu0 %v991
      %1023 = vmatprep.subr.bf16.mxu0 %v990
      %1024 = vmatpush1.bf16.msra.mxu0 %v989
      %1025 = vmatprep.subr.bf16.mxu0 0
      %1026 = vmatpush2.bf16.msra.mxu0 0
      %1027 = vmatprep.subr.bf16.mxu0 0
      %1028 = vmatpush2.bf16.msra.mxu0 0
      %1029 = vmatprep.subr.bf16.mxu0 0
      %1030 = vmatpush2.bf16.msra.mxu0 0
      %1031 = vmatprep.subr.bf16.mxu0 0
      %1032 = vmatpush2.bf16.msra.mxu0 0
      %1033 = vmatprep.subr.bf16.mxu0 0
      %1034 = vmatpush2.bf16.msra.mxu0 0
      %1035 = vmatprep.subr.bf16.mxu0 0
      %1036 = vmatpush2.bf16.msra.mxu0 0
      %1037 = vmatprep.subr.bf16.mxu0 0
      %1038 = vmatpush2.bf16.msra.mxu0 0
      %1039 = vmatprep.subr.bf16.mxu0 0
      %1040 = vmatpush2.bf16.msra.mxu0 0
      %1041 = vmatprep.mubr.bf16.mxu0 0
      %1042 = vmatmul.mubr.bf16.gmra.mxu0 %v998
      %v1043 = vpop.f32.mrf.mxu0
      %v1044 = vadd.f32 0.0, %v1043
      %v1045 = vpop.f32.mrf.mxu0
      %v1046 = vadd.f32 0.0, %v1045
      %v1047 = vpop.f32.mrf.mxu0
      %v1048 = vadd.f32 0.0, %v1047
      %v1049 = vpop.f32.mrf.mxu0
      %v1050 = vadd.f32 0.0, %v1049
      %1051 = vmatprep.mubr.bf16.mxu0 0
      %1052 = vmatmul.mubr.bf16.gmra.mxu0 %v1001
      %v1053 = vpop.f32.mrf.mxu0
      %v1054 = vadd.f32 0.0, %v1053
      %v1055 = vpop.f32.mrf.mxu0
      %v1056 = vadd.f32 0.0, %v1055
      %v1057 = vpop.f32.mrf.mxu0
      %v1058 = vadd.f32 0.0, %v1057
      %v1059 = vpop.f32.mrf.mxu0
      %v1060 = vadd.f32 0.0, %v1059
      %1061 = vmatprep.mubr.bf16.mxu0 0
      %1062 = vmatmul.mubr.bf16.gmra.mxu0 %v1004
      %v1063 = vpop.f32.mrf.mxu0
      %v1064 = vadd.f32 0.0, %v1063
      %v1065 = vpop.f32.mrf.mxu0
      %v1066 = vadd.f32 0.0, %v1065
      %v1067 = vpop.f32.mrf.mxu0
      %v1068 = vadd.f32 0.0, %v1067
      %v1069 = vpop.f32.mrf.mxu0
      %v1070 = vadd.f32 0.0, %v1069
      %1071 = vmatprep.mubr.bf16.mxu0 0
      %1072 = vmatmul.mubr.bf16.gmra.mxu0 %v1007
      %v1073 = vpop.f32.mrf.mxu0
      %v1074 = vadd.f32 0.0, %v1073
      %v1075 = vpop.f32.mrf.mxu0
      %v1076 = vadd.f32 0.0, %v1075
      %v1077 = vpop.f32.mrf.mxu0
      %v1078 = vadd.f32 0.0, %v1077
      %v1079 = vpop.f32.mrf.mxu0
      %v1080 = vadd.f32 0.0, %v1079
      %1081 = vdwg.mxu0
      %v1082 = vadd.f32 %v937, %v1044
      %v1083 = vadd.f32 %v938, %v1046
      %v1084 = vadd.f32 %v939, %v1048
      %v1085 = vadd.f32 %v940, %v1050
      %v1086 = vadd.f32 %v941, %v1054
      %v1087 = vadd.f32 %v942, %v1056
      %v1088 = vadd.f32 %v943, %v1058
      %v1089 = vadd.f32 %v944, %v1060
      %v1090 = vadd.f32 %v945, %v1064
      %v1091 = vadd.f32 %v946, %v1066
      %v1092 = vadd.f32 %v947, %v1068
      %v1093 = vadd.f32 %v948, %v1070
      %v1094 = vadd.f32 %v949, %v1074
      %v1095 = vadd.f32 %v950, %v1076
      %v1096 = vadd.f32 %v951, %v1078
      %v1097 = vadd.f32 %v952, %v1080
      %v1099 = vrot.slane %v269, 5
      %v1100 = vrot.slane %v1099, 4
      %v1101 = vrot.slane %v270, 5
      %v1102 = vsel %vm650, %v1100, %v1101
      %s1103 = scalar_lea.vmem %s3, 160
      %v1104 = vld [vmem:[%s1103] sm:$0xff]
      %v1105 = vld [vmem:[%s1103 + $0x8] sm:$0xff]
      %v1106 = vld [vmem:[%s1103 + $0x10] sm:$0xff]
      %v1107 = vld [vmem:[%s1103 + $0x18] sm:$0xff]
      %v1108 = vunpack.c.l.b16 %v1102
      %v1109 = vpack.c.b16 %v690, %v689
      %v1110 = vpack.c.b16 %v692, %v691
      %v1111 = vpack.c.b16 %v694, %v693
      %v1112 = vpack.c.b16 %v1108, %v695
      %v1117 = vunpack.c.l.b16 %v1104
      %v1118 = vunpack.c.h.b16 %v1104
      %v1119 = vunpack.c.l.b16 %v1105
      %v1120 = vunpack.c.h.b16 %v1105
      %v1121 = vunpack.c.l.b16 %v1106
      %v1122 = vunpack.c.h.b16 %v1106
      %v1123 = vunpack.c.l.b16 %v1107
      %v1124 = vunpack.c.h.b16 %v1107
      %v1125 = vpack.c.b16 %v1119, %v1117
      %v1126 = vpack.c.b16 %v1120, %v1118
      %v1127 = vpack.c.b16 %v1123, %v1121
      %v1128 = vpack.c.b16 %v1124, %v1122
      %v1134 = vsel %vm429, %v1109, 0
      %v1137 = vsel %vm429, %v1110, 0
      %v1140 = vsel %vm429, %v1111, 0
      %v1143 = vsel %vm429, %v1112, 0
      %1145 = vmatprep.subr.bf16.mxu0 0
      %1146 = vmatpush1.bf16.msra.mxu0 0
      %1147 = vmatprep.subr.bf16.mxu0 0
      %1148 = vmatpush1.bf16.msra.mxu0 0
      %1149 = vmatprep.subr.bf16.mxu0 0
      %1150 = vmatpush1.bf16.msra.mxu0 0
      %1151 = vmatprep.subr.bf16.mxu0 0
      %1152 = vmatpush1.bf16.msra.mxu0 0
      %1153 = vmatprep.subr.bf16.mxu0 0
      %1154 = vmatpush1.bf16.msra.mxu0 0
      %1155 = vmatprep.subr.bf16.mxu0 0
      %1156 = vmatpush1.bf16.msra.mxu0 0
      %1157 = vmatprep.subr.bf16.mxu0 %v1128
      %1158 = vmatpush1.bf16.msra.mxu0 %v1127
      %1159 = vmatprep.subr.bf16.mxu0 %v1126
      %1160 = vmatpush1.bf16.msra.mxu0 %v1125
      %1161 = vmatprep.subr.bf16.mxu0 0
      %1162 = vmatpush2.bf16.msra.mxu0 0
      %1163 = vmatprep.subr.bf16.mxu0 0
      %1164 = vmatpush2.bf16.msra.mxu0 0
      %1165 = vmatprep.subr.bf16.mxu0 0
      %1166 = vmatpush2.bf16.msra.mxu0 0
      %1167 = vmatprep.subr.bf16.mxu0 0
      %1168 = vmatpush2.bf16.msra.mxu0 0
      %1169 = vmatprep.subr.bf16.mxu0 0
      %1170 = vmatpush2.bf16.msra.mxu0 0
      %1171 = vmatprep.subr.bf16.mxu0 0
      %1172 = vmatpush2.bf16.msra.mxu0 0
      %1173 = vmatprep.subr.bf16.mxu0 0
      %1174 = vmatpush2.bf16.msra.mxu0 0
      %1175 = vmatprep.subr.bf16.mxu0 0
      %1176 = vmatpush2.bf16.msra.mxu0 0
      %1177 = vmatprep.mubr.bf16.mxu0 0
      %1178 = vmatmul.mubr.bf16.gmra.mxu0 %v1134
      %v1179 = vpop.f32.mrf.mxu0
      %v1180 = vadd.f32 0.0, %v1179
      %v1181 = vpop.f32.mrf.mxu0
      %v1182 = vadd.f32 0.0, %v1181
      %v1183 = vpop.f32.mrf.mxu0
      %v1184 = vadd.f32 0.0, %v1183
      %v1185 = vpop.f32.mrf.mxu0
      %v1186 = vadd.f32 0.0, %v1185
      %1187 = vmatprep.mubr.bf16.mxu0 0
      %1188 = vmatmul.mubr.bf16.gmra.mxu0 %v1137
      %v1189 = vpop.f32.mrf.mxu0
      %v1190 = vadd.f32 0.0, %v1189
      %v1191 = vpop.f32.mrf.mxu0
      %v1192 = vadd.f32 0.0, %v1191
      %v1193 = vpop.f32.mrf.mxu0
      %v1194 = vadd.f32 0.0, %v1193
      %v1195 = vpop.f32.mrf.mxu0
      %v1196 = vadd.f32 0.0, %v1195
      %1197 = vmatprep.mubr.bf16.mxu0 0
      %1198 = vmatmul.mubr.bf16.gmra.mxu0 %v1140
      %v1199 = vpop.f32.mrf.mxu0
      %v1200 = vadd.f32 0.0, %v1199
      %v1201 = vpop.f32.mrf.mxu0
      %v1202 = vadd.f32 0.0, %v1201
      %v1203 = vpop.f32.mrf.mxu0
      %v1204 = vadd.f32 0.0, %v1203
      %v1205 = vpop.f32.mrf.mxu0
      %v1206 = vadd.f32 0.0, %v1205
      %1207 = vmatprep.mubr.bf16.mxu0 0
      %1208 = vmatmul.mubr.bf16.gmra.mxu0 %v1143
      %v1209 = vpop.f32.mrf.mxu0
      %v1210 = vadd.f32 0.0, %v1209
      %v1211 = vpop.f32.mrf.mxu0
      %v1212 = vadd.f32 0.0, %v1211
      %v1213 = vpop.f32.mrf.mxu0
      %v1214 = vadd.f32 0.0, %v1213
      %v1215 = vpop.f32.mrf.mxu0
      %v1216 = vadd.f32 0.0, %v1215
      %1217 = vdwg.mxu0
      %v1218 = vadd.f32 %v1082, %v1180
      %v1219 = vadd.f32 %v1083, %v1182
      %v1220 = vadd.f32 %v1084, %v1184
      %v1221 = vadd.f32 %v1085, %v1186
      %v1222 = vadd.f32 %v1086, %v1190
      %v1223 = vadd.f32 %v1087, %v1192
      %v1224 = vadd.f32 %v1088, %v1194
      %v1225 = vadd.f32 %v1089, %v1196
      %v1226 = vadd.f32 %v1090, %v1200
      %v1227 = vadd.f32 %v1091, %v1202
      %v1228 = vadd.f32 %v1092, %v1204
      %v1229 = vadd.f32 %v1093, %v1206
      %v1230 = vadd.f32 %v1094, %v1210
      %v1231 = vadd.f32 %v1095, %v1212
      %v1232 = vadd.f32 %v1096, %v1214
      %v1233 = vadd.f32 %v1097, %v1216
      %s1234 = scalar_lea.vmem %s3, 192
      %v1235 = vld [vmem:[%s1234] sm:$0xff]
      %v1236 = vld [vmem:[%s1234 + $0x8] sm:$0xff]
      %v1237 = vld [vmem:[%s1234 + $0x10] sm:$0xff]
      %v1238 = vld [vmem:[%s1234 + $0x18] sm:$0xff]
      %v1240 = vunpack.c.l.b16 %v271
      %v1241 = vpack.c.b16 %v1240, %v827
      %v1246 = vunpack.c.l.b16 %v1235
      %v1247 = vunpack.c.h.b16 %v1235
      %v1248 = vunpack.c.l.b16 %v1236
      %v1249 = vunpack.c.h.b16 %v1236
      %v1250 = vunpack.c.l.b16 %v1237
      %v1251 = vunpack.c.h.b16 %v1237
      %v1252 = vunpack.c.l.b16 %v1238
      %v1253 = vunpack.c.h.b16 %v1238
      %v1254 = vpack.c.b16 %v1248, %v1246
      %v1255 = vpack.c.b16 %v1249, %v1247
      %v1256 = vpack.c.b16 %v1252, %v1250
      %v1257 = vpack.c.b16 %v1253, %v1251
      %v1263 = vsel %vm429, %v1241, 0
      %1265 = vmatprep.subr.bf16.mxu0 0
      %1266 = vmatpush1.bf16.msra.mxu0 0
      %1267 = vmatprep.subr.bf16.mxu0 0
      %1268 = vmatpush1.bf16.msra.mxu0 0
      %1269 = vmatprep.subr.bf16.mxu0 0
      %1270 = vmatpush1.bf16.msra.mxu0 0
      %1271 = vmatprep.subr.bf16.mxu0 0
      %1272 = vmatpush1.bf16.msra.mxu0 0
      %1273 = vmatprep.subr.bf16.mxu0 0
      %1274 = vmatpush1.bf16.msra.mxu0 0
      %1275 = vmatprep.subr.bf16.mxu0 0
      %1276 = vmatpush1.bf16.msra.mxu0 0
      %1277 = vmatprep.subr.bf16.mxu0 %v1257
      %1278 = vmatpush1.bf16.msra.mxu0 %v1256
      %1279 = vmatprep.subr.bf16.mxu0 %v1255
      %1280 = vmatpush1.bf16.msra.mxu0 %v1254
      %1281 = vmatprep.subr.bf16.mxu0 0
      %1282 = vmatpush2.bf16.msra.mxu0 0
      %1283 = vmatprep.subr.bf16.mxu0 0
      %1284 = vmatpush2.bf16.msra.mxu0 0
      %1285 = vmatprep.subr.bf16.mxu0 0
      %1286 = vmatpush2.bf16.msra.mxu0 0
      %1287 = vmatprep.subr.bf16.mxu0 0
      %1288 = vmatpush2.bf16.msra.mxu0 0
      %1289 = vmatprep.subr.bf16.mxu0 0
      %1290 = vmatpush2.bf16.msra.mxu0 0
      %1291 = vmatprep.subr.bf16.mxu0 0
      %1292 = vmatpush2.bf16.msra.mxu0 0
      %1293 = vmatprep.subr.bf16.mxu0 0
      %1294 = vmatpush2.bf16.msra.mxu0 0
      %1295 = vmatprep.subr.bf16.mxu0 0
      %1296 = vmatpush2.bf16.msra.mxu0 0
      %1297 = vmatprep.mubr.bf16.mxu0 0
      %1298 = vmatmul.mubr.bf16.gmra.mxu0 %v559
      %v1299 = vpop.f32.mrf.mxu0
      %v1300 = vadd.f32 0.0, %v1299
      %v1301 = vpop.f32.mrf.mxu0
      %v1302 = vadd.f32 0.0, %v1301
      %v1303 = vpop.f32.mrf.mxu0
      %v1304 = vadd.f32 0.0, %v1303
      %v1305 = vpop.f32.mrf.mxu0
      %v1306 = vadd.f32 0.0, %v1305
      %1307 = vmatprep.mubr.bf16.mxu0 0
      %1308 = vmatmul.mubr.bf16.gmra.mxu0 %v562
      %v1309 = vpop.f32.mrf.mxu0
      %v1310 = vadd.f32 0.0, %v1309
      %v1311 = vpop.f32.mrf.mxu0
      %v1312 = vadd.f32 0.0, %v1311
      %v1313 = vpop.f32.mrf.mxu0
      %v1314 = vadd.f32 0.0, %v1313
      %v1315 = vpop.f32.mrf.mxu0
      %v1316 = vadd.f32 0.0, %v1315
      %1317 = vmatprep.mubr.bf16.mxu0 0
      %1318 = vmatmul.mubr.bf16.gmra.mxu0 %v565
      %v1319 = vpop.f32.mrf.mxu0
      %v1320 = vadd.f32 0.0, %v1319
      %v1321 = vpop.f32.mrf.mxu0
      %v1322 = vadd.f32 0.0, %v1321
      %v1323 = vpop.f32.mrf.mxu0
      %v1324 = vadd.f32 0.0, %v1323
      %v1325 = vpop.f32.mrf.mxu0
      %v1326 = vadd.f32 0.0, %v1325
      %1327 = vmatprep.mubr.bf16.mxu0 0
      %1328 = vmatmul.mubr.bf16.gmra.mxu0 %v1263
      %v1329 = vpop.f32.mrf.mxu0
      %v1330 = vadd.f32 0.0, %v1329
      %v1331 = vpop.f32.mrf.mxu0
      %v1332 = vadd.f32 0.0, %v1331
      %v1333 = vpop.f32.mrf.mxu0
      %v1334 = vadd.f32 0.0, %v1333
      %v1335 = vpop.f32.mrf.mxu0
      %v1336 = vadd.f32 0.0, %v1335
      %1337 = vdwg.mxu0
      %v1338 = vadd.f32 %v1218, %v1300
      %v1339 = vadd.f32 %v1219, %v1302
      %v1340 = vadd.f32 %v1220, %v1304
      %v1341 = vadd.f32 %v1221, %v1306
      %v1342 = vadd.f32 %v1222, %v1310
      %v1343 = vadd.f32 %v1223, %v1312
      %v1344 = vadd.f32 %v1224, %v1314
      %v1345 = vadd.f32 %v1225, %v1316
      %v1346 = vadd.f32 %v1226, %v1320
      %v1347 = vadd.f32 %v1227, %v1322
      %v1348 = vadd.f32 %v1228, %v1324
      %v1349 = vadd.f32 %v1229, %v1326
      %v1350 = vadd.f32 %v1230, %v1330
      %v1351 = vadd.f32 %v1231, %v1332
      %v1352 = vadd.f32 %v1232, %v1334
      %v1353 = vadd.f32 %v1233, %v1336
      %v1355 = vshrl.u32 %v271, 16
      %v1357 = vrot.slane %v1355, 4
      %v1358 = vshll.u32 %v271, 16
      %v1360 = vrot.slane %v1358, 5
      %v1361 = vor.u32 %v1357, %v1360
      %v1362 = vrot.slane %v1361, 4
      %v1364 = vshll.u32 %v272, 16
      %v1366 = vrot.slane %v1364, 5
      %v1367 = vsel %vm279, %v1362, %v1366
      %s1368 = scalar_lea.vmem %s3, 224
      %v1369 = vld [vmem:[%s1368] sm:$0xff]
      %v1370 = vld [vmem:[%s1368 + $0x8] sm:$0xff]
      %v1371 = vld [vmem:[%s1368 + $0x10] sm:$0xff]
      %v1372 = vld [vmem:[%s1368 + $0x18] sm:$0xff]
      %v1373 = vunpack.c.l.b16 %v1367
      %v1374 = vpack.c.b16 %v1373, %v972
      %v1379 = vunpack.c.l.b16 %v1369
      %v1380 = vunpack.c.h.b16 %v1369
      %v1381 = vunpack.c.l.b16 %v1370
      %v1382 = vunpack.c.h.b16 %v1370
      %v1383 = vunpack.c.l.b16 %v1371
      %v1384 = vunpack.c.h.b16 %v1371
      %v1385 = vunpack.c.l.b16 %v1372
      %v1386 = vunpack.c.h.b16 %v1372
      %v1387 = vpack.c.b16 %v1381, %v1379
      %v1388 = vpack.c.b16 %v1382, %v1380
      %v1389 = vpack.c.b16 %v1385, %v1383
      %v1390 = vpack.c.b16 %v1386, %v1384
      %v1396 = vsel %vm429, %v1374, 0
      %1398 = vmatprep.subr.bf16.mxu0 0
      %1399 = vmatpush1.bf16.msra.mxu0 0
      %1400 = vmatprep.subr.bf16.mxu0 0
      %1401 = vmatpush1.bf16.msra.mxu0 0
      %1402 = vmatprep.subr.bf16.mxu0 0
      %1403 = vmatpush1.bf16.msra.mxu0 0
      %1404 = vmatprep.subr.bf16.mxu0 0
      %1405 = vmatpush1.bf16.msra.mxu0 0
      %1406 = vmatprep.subr.bf16.mxu0 0
      %1407 = vmatpush1.bf16.msra.mxu0 0
      %1408 = vmatprep.subr.bf16.mxu0 0
      %1409 = vmatpush1.bf16.msra.mxu0 0
      %1410 = vmatprep.subr.bf16.mxu0 %v1390
      %1411 = vmatpush1.bf16.msra.mxu0 %v1389
      %1412 = vmatprep.subr.bf16.mxu0 %v1388
      %1413 = vmatpush1.bf16.msra.mxu0 %v1387
      %1414 = vmatprep.subr.bf16.mxu0 0
      %1415 = vmatpush2.bf16.msra.mxu0 0
      %1416 = vmatprep.subr.bf16.mxu0 0
      %1417 = vmatpush2.bf16.msra.mxu0 0
      %1418 = vmatprep.subr.bf16.mxu0 0
      %1419 = vmatpush2.bf16.msra.mxu0 0
      %1420 = vmatprep.subr.bf16.mxu0 0
      %1421 = vmatpush2.bf16.msra.mxu0 0
      %1422 = vmatprep.subr.bf16.mxu0 0
      %1423 = vmatpush2.bf16.msra.mxu0 0
      %1424 = vmatprep.subr.bf16.mxu0 0
      %1425 = vmatpush2.bf16.msra.mxu0 0
      %1426 = vmatprep.subr.bf16.mxu0 0
      %1427 = vmatpush2.bf16.msra.mxu0 0
      %1428 = vmatprep.subr.bf16.mxu0 0
      %1429 = vmatpush2.bf16.msra.mxu0 0
      %1430 = vmatprep.mubr.bf16.mxu0 0
      %1431 = vmatmul.mubr.bf16.gmra.mxu0 %v434
      %v1432 = vpop.f32.mrf.mxu0
      %v1433 = vadd.f32 0.0, %v1432
      %v1434 = vpop.f32.mrf.mxu0
      %v1435 = vadd.f32 0.0, %v1434
      %v1436 = vpop.f32.mrf.mxu0
      %v1437 = vadd.f32 0.0, %v1436
      %v1438 = vpop.f32.mrf.mxu0
      %v1439 = vadd.f32 0.0, %v1438
      %1440 = vmatprep.mubr.bf16.mxu0 0
      %1441 = vmatmul.mubr.bf16.gmra.mxu0 %v437
      %v1442 = vpop.f32.mrf.mxu0
      %v1443 = vadd.f32 0.0, %v1442
      %v1444 = vpop.f32.mrf.mxu0
      %v1445 = vadd.f32 0.0, %v1444
      %v1446 = vpop.f32.mrf.mxu0
      %v1447 = vadd.f32 0.0, %v1446
      %v1448 = vpop.f32.mrf.mxu0
      %v1449 = vadd.f32 0.0, %v1448
      %1450 = vmatprep.mubr.bf16.mxu0 0
      %1451 = vmatmul.mubr.bf16.gmra.mxu0 %v440
      %v1452 = vpop.f32.mrf.mxu0
      %v1453 = vadd.f32 0.0, %v1452
      %v1454 = vpop.f32.mrf.mxu0
      %v1455 = vadd.f32 0.0, %v1454
      %v1456 = vpop.f32.mrf.mxu0
      %v1457 = vadd.f32 0.0, %v1456
      %v1458 = vpop.f32.mrf.mxu0
      %v1459 = vadd.f32 0.0, %v1458
      %1460 = vmatprep.mubr.bf16.mxu0 0
      %1461 = vmatmul.mubr.bf16.gmra.mxu0 %v1396
      %v1462 = vpop.f32.mrf.mxu0
      %v1463 = vadd.f32 0.0, %v1462
      %v1464 = vpop.f32.mrf.mxu0
      %v1465 = vadd.f32 0.0, %v1464
      %v1466 = vpop.f32.mrf.mxu0
      %v1467 = vadd.f32 0.0, %v1466
      %v1468 = vpop.f32.mrf.mxu0
      %v1469 = vadd.f32 0.0, %v1468
      %1470 = vdwg.mxu0
      %v1471 = vadd.f32 %v1338, %v1433
      %v1472 = vadd.f32 %v1339, %v1435
      %v1473 = vadd.f32 %v1340, %v1437
      %v1474 = vadd.f32 %v1341, %v1439
      %v1475 = vadd.f32 %v1342, %v1443
      %v1476 = vadd.f32 %v1343, %v1445
      %v1477 = vadd.f32 %v1344, %v1447
      %v1478 = vadd.f32 %v1345, %v1449
      %v1479 = vadd.f32 %v1346, %v1453
      %v1480 = vadd.f32 %v1347, %v1455
      %v1481 = vadd.f32 %v1348, %v1457
      %v1482 = vadd.f32 %v1349, %v1459
      %v1483 = vadd.f32 %v1350, %v1463
      %v1484 = vadd.f32 %v1351, %v1465
      %v1485 = vadd.f32 %v1352, %v1467
      %v1486 = vadd.f32 %v1353, %v1469
      %v1488 = vrot.slane %v271, 5
      %v1489 = vrot.slane %v1488, 4
      %v1490 = vrot.slane %v272, 5
      %v1491 = vsel %vm650, %v1489, %v1490
      %s1492 = scalar_lea.vmem %s3, 256
      %v1493 = vld [vmem:[%s1492] sm:$0xff]
      %v1494 = vld [vmem:[%s1492 + $0x8] sm:$0xff]
      %v1495 = vld [vmem:[%s1492 + $0x10] sm:$0xff]
      %v1496 = vld [vmem:[%s1492 + $0x18] sm:$0xff]
      %v1497 = vunpack.c.l.b16 %v1491
      %v1498 = vpack.c.b16 %v1497, %v1108
      %v1503 = vunpack.c.l.b16 %v1493
      %v1504 = vunpack.c.h.b16 %v1493
      %v1505 = vunpack.c.l.b16 %v1494
      %v1506 = vunpack.c.h.b16 %v1494
      %v1507 = vunpack.c.l.b16 %v1495
      %v1508 = vunpack.c.h.b16 %v1495
      %v1509 = vunpack.c.l.b16 %v1496
      %v1510 = vunpack.c.h.b16 %v1496
      %v1511 = vpack.c.b16 %v1505, %v1503
      %v1512 = vpack.c.b16 %v1506, %v1504
      %v1513 = vpack.c.b16 %v1509, %v1507
      %v1514 = vpack.c.b16 %v1510, %v1508
      %v1520 = vsel %vm429, %v1498, 0
      %1522 = vmatprep.subr.bf16.mxu0 0
      %1523 = vmatpush1.bf16.msra.mxu0 0
      %1524 = vmatprep.subr.bf16.mxu0 0
      %1525 = vmatpush1.bf16.msra.mxu0 0
      %1526 = vmatprep.subr.bf16.mxu0 0
      %1527 = vmatpush1.bf16.msra.mxu0 0
      %1528 = vmatprep.subr.bf16.mxu0 0
      %1529 = vmatpush1.bf16.msra.mxu0 0
      %1530 = vmatprep.subr.bf16.mxu0 0
      %1531 = vmatpush1.bf16.msra.mxu0 0
      %1532 = vmatprep.subr.bf16.mxu0 0
      %1533 = vmatpush1.bf16.msra.mxu0 0
      %1534 = vmatprep.subr.bf16.mxu0 %v1514
      %1535 = vmatpush1.bf16.msra.mxu0 %v1513
      %1536 = vmatprep.subr.bf16.mxu0 %v1512
      %1537 = vmatpush1.bf16.msra.mxu0 %v1511
      %1538 = vmatprep.subr.bf16.mxu0 0
      %1539 = vmatpush2.bf16.msra.mxu0 0
      %1540 = vmatprep.subr.bf16.mxu0 0
      %1541 = vmatpush2.bf16.msra.mxu0 0
      %1542 = vmatprep.subr.bf16.mxu0 0
      %1543 = vmatpush2.bf16.msra.mxu0 0
      %1544 = vmatprep.subr.bf16.mxu0 0
      %1545 = vmatpush2.bf16.msra.mxu0 0
      %1546 = vmatprep.subr.bf16.mxu0 0
      %1547 = vmatpush2.bf16.msra.mxu0 0
      %1548 = vmatprep.subr.bf16.mxu0 0
      %1549 = vmatpush2.bf16.msra.mxu0 0
      %1550 = vmatprep.subr.bf16.mxu0 0
      %1551 = vmatpush2.bf16.msra.mxu0 0
      %1552 = vmatprep.subr.bf16.mxu0 0
      %1553 = vmatpush2.bf16.msra.mxu0 0
      %1554 = vmatprep.mubr.bf16.mxu0 0
      %1555 = vmatmul.mubr.bf16.gmra.mxu0 %v724
      %v1556 = vpop.f32.mrf.mxu0
      %v1557 = vadd.f32 0.0, %v1556
      %v1558 = vpop.f32.mrf.mxu0
      %v1559 = vadd.f32 0.0, %v1558
      %v1560 = vpop.f32.mrf.mxu0
      %v1561 = vadd.f32 0.0, %v1560
      %v1562 = vpop.f32.mrf.mxu0
      %v1563 = vadd.f32 0.0, %v1562
      %1564 = vmatprep.mubr.bf16.mxu0 0
      %1565 = vmatmul.mubr.bf16.gmra.mxu0 %v727
      %v1566 = vpop.f32.mrf.mxu0
      %v1567 = vadd.f32 0.0, %v1566
      %v1568 = vpop.f32.mrf.mxu0
      %v1569 = vadd.f32 0.0, %v1568
      %v1570 = vpop.f32.mrf.mxu0
      %v1571 = vadd.f32 0.0, %v1570
      %v1572 = vpop.f32.mrf.mxu0
      %v1573 = vadd.f32 0.0, %v1572
      %1574 = vmatprep.mubr.bf16.mxu0 0
      %1575 = vmatmul.mubr.bf16.gmra.mxu0 %v730
      %v1576 = vpop.f32.mrf.mxu0
      %v1577 = vadd.f32 0.0, %v1576
      %v1578 = vpop.f32.mrf.mxu0
      %v1579 = vadd.f32 0.0, %v1578
      %v1580 = vpop.f32.mrf.mxu0
      %v1581 = vadd.f32 0.0, %v1580
      %v1582 = vpop.f32.mrf.mxu0
      %v1583 = vadd.f32 0.0, %v1582
      %1584 = vmatprep.mubr.bf16.mxu0 0
      %1585 = vmatmul.mubr.bf16.gmra.mxu0 %v1520
      %v1586 = vpop.f32.mrf.mxu0
      %v1587 = vadd.f32 0.0, %v1586
      %v1588 = vpop.f32.mrf.mxu0
      %v1589 = vadd.f32 0.0, %v1588
      %v1590 = vpop.f32.mrf.mxu0
      %v1591 = vadd.f32 0.0, %v1590
      %v1592 = vpop.f32.mrf.mxu0
      %v1593 = vadd.f32 0.0, %v1592
      %1594 = vdwg.mxu0
      %v1595 = vadd.f32 %v1471, %v1557
      %v1596 = vadd.f32 %v1472, %v1559
      %v1597 = vadd.f32 %v1473, %v1561
      %v1598 = vadd.f32 %v1474, %v1563
      %v1599 = vadd.f32 %v1475, %v1567
      %v1600 = vadd.f32 %v1476, %v1569
      %v1601 = vadd.f32 %v1477, %v1571
      %v1602 = vadd.f32 %v1478, %v1573
      %v1603 = vadd.f32 %v1479, %v1577
      %v1604 = vadd.f32 %v1480, %v1579
      %v1605 = vadd.f32 %v1481, %v1581
      %v1606 = vadd.f32 %v1482, %v1583
      %v1607 = vadd.f32 %v1483, %v1587
      %v1608 = vadd.f32 %v1484, %v1589
      %v1609 = vadd.f32 %v1485, %v1591
      %v1610 = vadd.f32 %v1486, %v1593
      %v1611 = vld [vmem:[%s222] sm:$0x3]
      %v1613 = vlaneseq
      %v1614 = vshrl.u32 %v1613, 7
      %v1615 = vsub.s32 0, %v1614
      %v1616 = vrot.slane %v1611, %v1615
      %v1617 = vlaneseq
      %v1618 = vshrl.u32 %v1617, 7
      %v1619 = vsub.s32 1, %v1618
      %v1620 = vrot.slane %v1611, %v1619
      %v1623 = vmul.f32 %v1595, %v1616
      %v1624 = vmul.f32 %v1596, %v1620
      %v1625 = vmul.f32 %v1597, %v1616
      %v1626 = vmul.f32 %v1598, %v1620
      %v1627 = vmul.f32 %v1599, %v1616
      %v1628 = vmul.f32 %v1600, %v1620
      %v1629 = vmul.f32 %v1601, %v1616
      %v1630 = vmul.f32 %v1602, %v1620
      %v1631 = vmul.f32 %v1603, %v1616
      %v1632 = vmul.f32 %v1604, %v1620
      %v1633 = vmul.f32 %v1605, %v1616
      %v1634 = vmul.f32 %v1606, %v1620
      %v1635 = vmul.f32 %v1607, %v1616
      %v1636 = vmul.f32 %v1608, %v1620
      %v1637 = vmul.f32 %v1609, %v1616
      %v1638 = vmul.f32 %v1610, %v1620
      %v1639 = vld [vmem:[%s226] sm:$0x3]
      %v1641 = vlaneseq
      %v1642 = vshrl.u32 %v1641, 7
      %v1643 = vsub.s32 0, %v1642
      %v1644 = vrot.slane %v1639, %v1643
      %v1645 = vlaneseq
      %v1646 = vshrl.u32 %v1645, 7
      %v1647 = vsub.s32 1, %v1646
      %v1648 = vrot.slane %v1639, %v1647
      %v1651 = vadd.f32 %v1623, %v1644
      %v1652 = vadd.f32 %v1624, %v1648
      %v1653 = vadd.f32 %v1625, %v1644
      %v1654 = vadd.f32 %v1626, %v1648
      %v1655 = vadd.f32 %v1627, %v1644
      %v1656 = vadd.f32 %v1628, %v1648
      %v1657 = vadd.f32 %v1629, %v1644
      %v1658 = vadd.f32 %v1630, %v1648
      %v1659 = vadd.f32 %v1631, %v1644
      %v1660 = vadd.f32 %v1632, %v1648
      %v1661 = vadd.f32 %v1633, %v1644
      %v1662 = vadd.f32 %v1634, %v1648
      %v1663 = vadd.f32 %v1635, %v1644
      %v1664 = vadd.f32 %v1636, %v1648
      %v1665 = vadd.f32 %v1637, %v1644
      %v1666 = vadd.f32 %v1638, %v1648
      %v1667 = vpack.c.bf16 %v1653, %v1651
      %v1668 = vpack.c.bf16 %v1654, %v1652
      %v1669 = vpack.c.bf16 %v1657, %v1655
      %v1670 = vpack.c.bf16 %v1658, %v1656
      %v1671 = vpack.c.bf16 %v1661, %v1659
      %v1672 = vpack.c.bf16 %v1662, %v1660
      %v1673 = vpack.c.bf16 %v1665, %v1663
      %v1674 = vpack.c.bf16 %v1666, %v1664
      %v1683 = vunpack.c.l.b16 %v1667
      %v1684 = vunpack.c.l.b16 %v1668
      %v1685 = vunpack.c.h.b16 %v1667
      %v1686 = vunpack.c.h.b16 %v1668
      %v1687 = vunpack.c.l.b16 %v1669
      %v1688 = vunpack.c.l.b16 %v1670
      %v1689 = vunpack.c.h.b16 %v1669
      %v1690 = vunpack.c.h.b16 %v1670
      %v1691 = vunpack.c.l.b16 %v1671
      %v1692 = vunpack.c.l.b16 %v1672
      %v1693 = vunpack.c.h.b16 %v1671
      %v1694 = vunpack.c.h.b16 %v1672
      %v1695 = vunpack.c.l.b16 %v1673
      %v1696 = vunpack.c.l.b16 %v1674
      %v1697 = vunpack.c.h.b16 %v1673
      %v1698 = vunpack.c.h.b16 %v1674
      %v1699 = vpack.c.b16 %v1684, %v1683
      %v1700 = vpack.c.b16 %v1686, %v1685
      %v1701 = vpack.c.b16 %v1688, %v1687
      %v1702 = vpack.c.b16 %v1690, %v1689
      %v1703 = vpack.c.b16 %v1692, %v1691
      %v1704 = vpack.c.b16 %v1694, %v1693
      %v1705 = vpack.c.b16 %v1696, %v1695
      %v1706 = vpack.c.b16 %v1698, %v1697
      %1715 = vst [vmem:[%s231] sm:$0xff] %v1699
      %1716 = vst [vmem:[%s231 + $0x8] sm:$0xff] %v1700
      %1717 = vst [vmem:[%s231 + $0x10] sm:$0xff] %v1701
      %1718 = vst [vmem:[%s231 + $0x18] sm:$0xff] %v1702
      %1719 = vst [vmem:[%s231 + $0x20] sm:$0xff] %v1703
      %1720 = vst [vmem:[%s231 + $0x28] sm:$0xff] %v1704
      %1721 = vst [vmem:[%s231 + $0x30] sm:$0xff] %v1705
      %1722 = vst [vmem:[%s231 + $0x38] sm:$0xff] %v1706
      %p1723 = scmp.lt.s32.totalorder %s15, 1
      %s1724 = scalar_select %p1723, %s15, 1
      %s1725 = smul.addr %s1724, 16
      %s1726 = smul.addr %s1725, 4
      %s1727 = scalar_lea.vmem %s4, %s1726
      // Predicated region
      $region37: #{upconv2d_block_cbn_cond.1} parent=35 // pred_check
        %p1728 = pneg %p132
      $region38: #{upconv2d_block_cbn_cond.1} parent=35 // pred_check_branch
        %1730 = sbr.rel (%p1728) target = $region40
      $region39: #{upconv2d_block_cbn_cond.1} parent=35 // pred_region
        _
      $region40: #{upconv2d_block_cbn_cond.1} parent=35 // pred_fallthru
        _
    $region36: #{upconv2d_block_cbn_cond.1} parent=5 // pred_fallthru
      _
    %p1731 = scmp.le.s32.totalorder 2, %s10
    // Predicated region
    $region41: #{upconv2d_block_cbn_cond.1} parent=5 // pred_check
      %p1732 = pneg %p1731
    $region42: #{upconv2d_block_cbn_cond.1} parent=5 // pred_check_branch
      %1734 = sbr.rel (%p1732) target = $region44
    $region43: #{upconv2d_block_cbn_cond.1} parent=5 // pred_region
      %s1735 = ssub.s32 %s10, 2
      // Predicated region
      $region45: #{upconv2d_block_cbn_cond.1} parent=43 // pred_check
        %p1736 = pneg %p138
      $region46: #{upconv2d_block_cbn_cond.1} parent=43 // pred_check_branch
        %1738 = sbr.rel (%p1736) target = $region48
      $region47: #{upconv2d_block_cbn_cond.1} parent=43 // pred_region
        %p1739 = scmp.lt.s32.totalorder %s16, 1
        %s1740 = scalar_select %p1739, %s16, 1
        %s1741 = smul.addr %s1740, 16
        %s1742 = smul.addr %s1741, 4
        %s1743 = scalar_lea.vmem %s4, %s1742
      $region48: #{upconv2d_block_cbn_cond.1} parent=43 // pred_fallthru
        _
    $region44: #{upconv2d_block_cbn_cond.1} parent=5 // pred_fallthru
      _
  $region6: #{upconv2d_block_cbn_cond.1} parent=0 // loop_footer
    %s14 = sadd.s32 1, %s10
  $region7: #{upconv2d_block_cbn_cond.1} parent=0 // loop_footer_branch
    %9 = sbr.rel target = $region3
  $region8: #{upconv2d_block_cbn_cond.1} parent=0 // loop_exit
    _

</llo_original>
